<compile_context>
chip_gen: v7x
topology: tpu7x:2x2x1
jax: 0.10.0
libtpu: 0.0.40
codegen_flags: <defaults>
</compile_context>

<pallas_src>
import numpy as np
import jax
import jax.numpy as jnp
from jax.experimental import pallas as pl
from jax.experimental.pallas import tpu as pltpu

A_DIM = 49    # action dim fixed by `torch.zeros(B, 49)`
LANES = 128   # lane-dense slab width for action lanes / padded hidden dim

ORGANS = ['Lung fields', 'Airways', 'Heart', 'Pulmonary vasculature',
          'Mediastinum', 'Spine', 'Abdomen', 'Diaphragm', 'Shoulders',
          'Ribs', 'Clavicles', 'Costophrenic angles']


# ---------------------------------------------------------------------------
# Pallas kernel: only the genuinely sequential part of the forward —
# the 12-organ chained policy MLP (action_i depends on action_{i-1}).
# Single grid step; the organ loop is fully unrolled inside the body.
# ---------------------------------------------------------------------------
def _make_chain_kernel(n_organs):
    def kernel(base_ref, w1a_ref, w2_ref, b2_ref, actions_ref):
        act = None
        for i in range(n_organs):          # fully unrolled: one grid step total
            pre = base_ref[i]              # feat@W1_f + em[i]@W1_t + b1 (precomputed)
            if i > 0:                      # organ 0 uses the all-zero initial action
                pre = pre + jnp.dot(act, w1a_ref[...],
                                    preferred_element_type=jnp.float32)
            h = jnp.tanh(pre)
            logits = jnp.dot(h, w2_ref[...],
                             preferred_element_type=jnp.float32) + b2_ref[...]
            act = (logits > 0.0).astype(jnp.float32)   # sigmoid(x) > 0.5  <=>  x > 0
            actions_ref[i] = act           # lane-dense (B_pad, 128) store into VMEM block
    return kernel


def get_not_in_patch_masks(n_organs):
    # TODO(synk): patch_data.json unavailable; synthesize deterministic Not_in_patch indices.
    masks = np.ones((n_organs, A_DIM), np.float32)
    for i in range(n_organs):
        not_in = [(i * 4 + 7 * k) % A_DIM for k in range(4)]
        masks[i, not_in] = 0.0
    return jnp.asarray(masks)


# ---------------------------------------------------------------------------
# Device-side forward: hoisted XLA prep  +  single pallas_call  +  XLA post.
# ---------------------------------------------------------------------------
@jax.jit
def _forward_device(em, image_feature, masks, w1, b1, w2, b2):
    B, D, P = image_feature.shape
    n, E = em.shape
    H = w1.shape[1]
    B_pad = max(8, ((B + 7) // 8) * 8)
    HP = max(LANES, ((H + LANES - 1) // LANES) * LANES)   # hidden padded lane-dense

    em = em.astype(jnp.float32)
    img = image_feature.astype(jnp.float32)
    w1 = w1.astype(jnp.float32)
    b1 = b1.astype(jnp.float32).reshape(1, H)
    w2 = w2.astype(jnp.float32)
    b2 = b2.astype(jnp.float32).reshape(1, A_DIM)

    # ---- organ-invariant / action-independent work, hoisted OUT of the kernel
    feat = jnp.sum(img, axis=2)                                  # (B, D) patch-sum, once
    w1_feat = w1[:D]                                             # (D, H)
    w1_act = w1[D:D + A_DIM]                                     # (49, H)
    w1_text = w1[D + A_DIM:]                                     # (E, H)
    # per-organ pre-activation base = feat@W1_f + em[i]@W1_t + b1, broadcast over batch
    base = (feat @ w1_feat)[None, :, :] + (em @ w1_text)[:, None, :] + b1[None]  # (n, B, H)

    # ---- pad to sublane(8) / lane(128)-dense shapes (once, in XLA)
    base_p = jnp.zeros((n, B_pad, HP), jnp.float32).at[:, :B, :H].set(base)
    w1a_p = jnp.zeros((LANES, HP), jnp.float32).at[:A_DIM, :H].set(w1_act)
    w2_p = jnp.zeros((HP, LANES), jnp.float32).at[:H, :A_DIM].set(w2)
    b2_p = jnp.zeros((1, LANES), jnp.float32).at[:, :A_DIM].set(b2)

    kernel = _make_chain_kernel(n)

    actions_p = pl.pallas_call(
        kernel,
        out_shape=jax.ShapeDtypeStruct((n, B_pad, LANES), jnp.float32),
        grid=(1,),                                               # single step, loop unrolled
        in_specs=[
            pl.BlockSpec((n, B_pad, HP), lambda i: (0, 0, 0)),   # per-organ MLP base
            pl.BlockSpec((LANES, HP), lambda i: (0, 0)),         # W1 action rows (padded)
            pl.BlockSpec((HP, LANES), lambda i: (0, 0)),         # W2 (padded)
            pl.BlockSpec((1, LANES), lambda i: (0, 0)),          # b2 (padded)
        ],
        out_specs=pl.BlockSpec((n, B_pad, LANES), lambda i: (0, 0, 0)),
        compiler_params=pltpu.CompilerParams(
            dimension_semantics=("arbitrary",)),                 # serial chain, one TC
    )(base_p, w1a_p, w2_p, b2_p)

    actions = actions_p[:, :B, :A_DIM]                           # (n, B, 49)

    # ---- state / next_state / reward rebuilt in plain XLA from the actions.
    # The torch loop uses the OLD action (pre policy update) for state, next_state
    # and reward, so organ i uses actions[i-1] (zeros for i == 0).
    old_actions = jnp.concatenate(
        [jnp.zeros((1, B, A_DIM), jnp.float32), actions[:-1]], axis=0)   # (n, B, 49)
    text = jnp.broadcast_to(em[:, None, :], (n, B, E))
    feat_b = jnp.broadcast_to(feat[None], (n, B, D))
    states = jnp.concatenate([feat_b, old_actions, text], axis=-1)       # (n, B, D+49+E)

    m = masks[:, None, :]                                                # (n, 1, 49)
    result = jnp.where(old_actions == m, 1.0,
                       jnp.where(m == 0.0, 0.0, -1.0))
    rewards = jnp.sum(result, axis=(1, 2))                               # (n,)

    return states, actions, rewards


# ---------------------------------------------------------------------------
# local_agent.forward — host-side glue (lists / nonzero / dones)
# ---------------------------------------------------------------------------
def local_agent_forward(em, image_feature, params):
    n = len(ORGANS)
    masks = get_not_in_patch_masks(n)

    states, actions, rewards = _forward_device(
        em, image_feature, masks,
        params['w1'], params['b1'], params['w2'], params['b2'])

    # Single device->host transfer for the `nonzero().squeeze().tolist()` glue.
    actions_np = np.asarray(actions)

    transition_dict = {'states': [], 'actions': [], 'next_states': [],
                       'rewards': [], 'dones': []}
    local_action, selected_patches = [], []
    for i, name in enumerate(ORGANS):
        st = states[i]
        act = actions[i]
        transition_dict['states'].append(st)
        transition_dict['actions'].append(act)
        # next_state is built from the identical (image_feature, old action,
        # text_em) as state in the torch code, so it is the same tensor value.
        transition_dict['next_states'].append(st)
        transition_dict['dones'].append(
            jnp.asarray(float(name == 'Costophrenic angles'), jnp.float32))
        transition_dict['rewards'].append(rewards[i].reshape(1))
        local_action.append(act)
        selected_patches.append(np.argwhere(actions_np[i]).squeeze().tolist())

    return local_action, transition_dict, selected_patches


if __name__ == "__main__":
    B, D, P, E, H = 2, 32, 16, 32, 32          # small, forward-consistent shapes
    S = D + A_DIM + E                          # state dim = 113

    key = jax.random.PRNGKey(0)
    k_em, k_img, k_w1, k_w2 = jax.random.split(key, 4)

    em = jax.random.normal(k_em, (len(ORGANS), E), jnp.float32)
    image_feature = jax.random.normal(k_img, (B, D, P), jnp.float32)

    # TODO(synk): external PPO agent unavailable; deterministic 2-layer MLP policy stands in.
    params = {
        'w1': jax.random.normal(k_w1, (S, H), jnp.float32) * 0.1,
        'b1': jnp.zeros((1, H), jnp.float32),
        'w2': jax.random.normal(k_w2, (H, A_DIM), jnp.float32) * 0.1,
        'b2': jnp.zeros((1, A_DIM), jnp.float32),
    }

    local_action, transition_dict, selected_patches = local_agent_forward(
        em, image_feature, params)

    jax.block_until_ready(local_action)
    jax.block_until_ready(transition_dict['states'])
    jax.block_until_ready(transition_dict['rewards'])

    # --- sanity checks against a pure-jnp/numpy reference --------------------
    # state for organ 0 (old action is all-zero): concat(feat, zeros, em[0])
    feat_ref = jnp.sum(image_feature, axis=2)
    state0_ref = jnp.concatenate(
        [feat_ref, jnp.zeros((B, A_DIM), jnp.float32),
         jnp.broadcast_to(em[0:1, :], (B, E))], axis=1)
    np.testing.assert_allclose(np.asarray(transition_dict['states'][0]),
                               np.asarray(state0_ref), rtol=1e-5, atol=1e-5)

    # reward for organ 0 with the zero old action: where(mask==0, 1, -1).sum() over B rows
    mask0 = np.asarray(get_not_in_patch_masks(len(ORGANS)))[0]
    r0_ref = float(B * np.where(mask0 == 0.0, 1.0, -1.0).sum())
    np.testing.assert_allclose(np.asarray(transition_dict['rewards'][0]),
                               np.array([r0_ref], np.float32), rtol=0, atol=1e-5)

    acts = np.stack([np.asarray(a) for a in local_action])
    assert acts.shape == (len(ORGANS), B, A_DIM)
    assert set(np.unique(acts)).issubset({0.0, 1.0})        # binary actions
    assert len(local_action) == len(ORGANS)
    assert local_action[0].shape == (B, A_DIM)
    assert transition_dict['states'][0].shape == (B, S)
    assert transition_dict['next_states'][0].shape == (B, S)
    assert len(selected_patches) == len(ORGANS)
    print("KERNEL_OK")
</pallas_src>

<mosaic_0001>
module attributes {stable_mosaic.version = 11 : i64} {
  func.func @kernel(%arg0: i32, %arg1: memref<12x8x128xf32, #tpu.memory_space<vmem>>, %arg2: memref<128x128xf32, #tpu.memory_space<vmem>>, %arg3: memref<128x128xf32, #tpu.memory_space<vmem>>, %arg4: memref<1x128xf32, #tpu.memory_space<vmem>>, %arg5: memref<12x8x128xf32, #tpu.memory_space<vmem>>) attributes {dimension_semantics = [#tpu.dimension_semantics<arbitrary>], iteration_bounds = array<i64: 1>, scalar_prefetch = 0 : i64, scratch_operands = 0 : i64, tpu.core_type = #tpu.core_type<tc>, window_params = [{pipeline_mode = #tpu.pipeline_mode<synchronous>, transform_indices = @transform_0, window_bounds = array<i64: 12, 8, 128>}, {pipeline_mode = #tpu.pipeline_mode<synchronous>, transform_indices = @transform_1, window_bounds = array<i64: 128, 128>}, {pipeline_mode = #tpu.pipeline_mode<synchronous>, transform_indices = @transform_2, window_bounds = array<i64: 128, 128>}, {pipeline_mode = #tpu.pipeline_mode<synchronous>, transform_indices = @transform_3, window_bounds = array<i64: 1, 128>}, {pipeline_mode = #tpu.pipeline_mode<synchronous>, transform_indices = @transform_4, window_bounds = array<i64: 12, 8, 128>}]} {
    %c0 = arith.constant 0 : index
    %c0_0 = arith.constant 0 : index
    %c0_1 = arith.constant 0 : index
    %0 = vector.load %arg1[%c0, %c0_0, %c0_1] : memref<12x8x128xf32, #tpu.memory_space<vmem>>, vector<1x8x128xf32>
    %1 = vector.shape_cast %0 : vector<1x8x128xf32> to vector<8x128xf32>
    %2 = math.tanh %1 : vector<8x128xf32>
    %c0_2 = arith.constant 0 : index
    %c0_3 = arith.constant 0 : index
    %3 = vector.load %arg3[%c0_2, %c0_3] : memref<128x128xf32, #tpu.memory_space<vmem>>, vector<128x128xf32>
    %cst = arith.constant dense<0.000000e+00> : vector<8x128xf32>
    %4 = tpu.matmul %2, %3, %cst {dimension_numbers = #tpu.dot_dimension_numbers<[1], [0], [0], [1], [0, 0, 1, 1], [], []>} : vector<8x128xf32>, vector<128x128xf32>, vector<8x128xf32> -> vector<8x128xf32>
    %c0_4 = arith.constant 0 : index
    %c0_5 = arith.constant 0 : index
    %5 = vector.load %arg4[%c0_4, %c0_5] : memref<1x128xf32, #tpu.memory_space<vmem>>, vector<1x128xf32>
    %6 = vector.broadcast %5 : vector<1x128xf32> to vector<8x128xf32>
    %7 = arith.addf %4, %6 : vector<8x128xf32>
    %cst_6 = arith.constant 0.000000e+00 : f32
    %8 = vector.broadcast %cst_6 : f32 to vector<8x128xf32>
    %9 = arith.cmpf ogt, %7, %8 : vector<8x128xf32>
    %10 = arith.extui %9 : vector<8x128xi1> to vector<8x128xi32>
    %11 = arith.sitofp %10 : vector<8x128xi32> to vector<8x128xf32>
    %c0_7 = arith.constant 0 : index
    %c0_8 = arith.constant 0 : index
    %c0_9 = arith.constant 0 : index
    %12 = vector.load %arg5[%c0_7, %c0_8, %c0_9] : memref<12x8x128xf32, #tpu.memory_space<vmem>>, vector<1x8x128xf32>
    %13 = vector.shape_cast %12 : vector<1x8x128xf32> to vector<8x128xf32>
    %14 = vector.shape_cast %11 : vector<8x128xf32> to vector<1x8x128xf32>
    tpu.vector_store %arg5[%c0_7, %c0_8, %c0_9], %14 {strides = array<i32>} : memref<12x8x128xf32, #tpu.memory_space<vmem>>, vector<1x8x128xf32>,
    %c1 = arith.constant 1 : index
    %c0_10 = arith.constant 0 : index
    %c0_11 = arith.constant 0 : index
    %15 = vector.load %arg1[%c1, %c0_10, %c0_11] : memref<12x8x128xf32, #tpu.memory_space<vmem>>, vector<1x8x128xf32>
    %16 = vector.shape_cast %15 : vector<1x8x128xf32> to vector<8x128xf32>
    %c0_12 = arith.constant 0 : index
    %c0_13 = arith.constant 0 : index
    %17 = vector.load %arg2[%c0_12, %c0_13] : memref<128x128xf32, #tpu.memory_space<vmem>>, vector<128x128xf32>
    %cst_14 = arith.constant dense<0.000000e+00> : vector<8x128xf32>
    %18 = tpu.matmul %11, %17, %cst_14 {dimension_numbers = #tpu.dot_dimension_numbers<[1], [0], [0], [1], [0, 0, 1, 1], [], []>} : vector<8x128xf32>, vector<128x128xf32>, vector<8x128xf32> -> vector<8x128xf32>
    %19 = arith.addf %16, %18 : vector<8x128xf32>
    %20 = math.tanh %19 : vector<8x128xf32>
    %c0_15 = arith.constant 0 : index
    %c0_16 = arith.constant 0 : index
    %21 = vector.load %arg3[%c0_15, %c0_16] : memref<128x128xf32, #tpu.memory_space<vmem>>, vector<128x128xf32>
    %cst_17 = arith.constant dense<0.000000e+00> : vector<8x128xf32>
    %22 = tpu.matmul %20, %21, %cst_17 {dimension_numbers = #tpu.dot_dimension_numbers<[1], [0], [0], [1], [0, 0, 1, 1], [], []>} : vector<8x128xf32>, vector<128x128xf32>, vector<8x128xf32> -> vector<8x128xf32>
    %c0_18 = arith.constant 0 : index
    %c0_19 = arith.constant 0 : index
    %23 = vector.load %arg4[%c0_18, %c0_19] : memref<1x128xf32, #tpu.memory_space<vmem>>, vector<1x128xf32>
    %24 = vector.broadcast %23 : vector<1x128xf32> to vector<8x128xf32>
    %25 = arith.addf %22, %24 : vector<8x128xf32>
    %cst_20 = arith.constant 0.000000e+00 : f32
    %26 = vector.broadcast %cst_20 : f32 to vector<8x128xf32>
    %27 = arith.cmpf ogt, %25, %26 : vector<8x128xf32>
    %28 = arith.extui %27 : vector<8x128xi1> to vector<8x128xi32>
    %29 = arith.sitofp %28 : vector<8x128xi32> to vector<8x128xf32>
    %c1_21 = arith.constant 1 : index
    %c0_22 = arith.constant 0 : index
    %c0_23 = arith.constant 0 : index
    %30 = vector.load %arg5[%c1_21, %c0_22, %c0_23] : memref<12x8x128xf32, #tpu.memory_space<vmem>>, vector<1x8x128xf32>
    %31 = vector.shape_cast %30 : vector<1x8x128xf32> to vector<8x128xf32>
    %32 = vector.shape_cast %29 : vector<8x128xf32> to vector<1x8x128xf32>
    tpu.vector_store %arg5[%c1_21, %c0_22, %c0_23], %32 {strides = array<i32>} : memref<12x8x128xf32, #tpu.memory_space<vmem>>, vector<1x8x128xf32>,
    %c2 = arith.constant 2 : index
    %c0_24 = arith.constant 0 : index
    %c0_25 = arith.constant 0 : index
    %33 = vector.load %arg1[%c2, %c0_24, %c0_25] : memref<12x8x128xf32, #tpu.memory_space<vmem>>, vector<1x8x128xf32>
    %34 = vector.shape_cast %33 : vector<1x8x128xf32> to vector<8x128xf32>
    %c0_26 = arith.constant 0 : index
    %c0_27 = arith.constant 0 : index
    %35 = vector.load %arg2[%c0_26, %c0_27] : memref<128x128xf32, #tpu.memory_space<vmem>>, vector<128x128xf32>
    %cst_28 = arith.constant dense<0.000000e+00> : vector<8x128xf32>
    %36 = tpu.matmul %29, %35, %cst_28 {dimension_numbers = #tpu.dot_dimension_numbers<[1], [0], [0], [1], [0, 0, 1, 1], [], []>} : vector<8x128xf32>, vector<128x128xf32>, vector<8x128xf32> -> vector<8x128xf32>
    %37 = arith.addf %34, %36 : vector<8x128xf32>
    %38 = math.tanh %37 : vector<8x128xf32>
    %c0_29 = arith.constant 0 : index
    %c0_30 = arith.constant 0 : index
    %39 = vector.load %arg3[%c0_29, %c0_30] : memref<128x128xf32, #tpu.memory_space<vmem>>, vector<128x128xf32>
    %cst_31 = arith.constant dense<0.000000e+00> : vector<8x128xf32>
    %40 = tpu.matmul %38, %39, %cst_31 {dimension_numbers = #tpu.dot_dimension_numbers<[1], [0], [0], [1], [0, 0, 1, 1], [], []>} : vector<8x128xf32>, vector<128x128xf32>, vector<8x128xf32> -> vector<8x128xf32>
    %c0_32 = arith.constant 0 : index
    %c0_33 = arith.constant 0 : index
    %41 = vector.load %arg4[%c0_32, %c0_33] : memref<1x128xf32, #tpu.memory_space<vmem>>, vector<1x128xf32>
    %42 = vector.broadcast %41 : vector<1x128xf32> to vector<8x128xf32>
    %43 = arith.addf %40, %42 : vector<8x128xf32>
    %cst_34 = arith.constant 0.000000e+00 : f32
    %44 = vector.broadcast %cst_34 : f32 to vector<8x128xf32>
    %45 = arith.cmpf ogt, %43, %44 : vector<8x128xf32>
    %46 = arith.extui %45 : vector<8x128xi1> to vector<8x128xi32>
    %47 = arith.sitofp %46 : vector<8x128xi32> to vector<8x128xf32>
    %c2_35 = arith.constant 2 : index
    %c0_36 = arith.constant 0 : index
    %c0_37 = arith.constant 0 : index
    %48 = vector.load %arg5[%c2_35, %c0_36, %c0_37] : memref<12x8x128xf32, #tpu.memory_space<vmem>>, vector<1x8x128xf32>
    %49 = vector.shape_cast %48 : vector<1x8x128xf32> to vector<8x128xf32>
    %50 = vector.shape_cast %47 : vector<8x128xf32> to vector<1x8x128xf32>
    tpu.vector_store %arg5[%c2_35, %c0_36, %c0_37], %50 {strides = array<i32>} : memref<12x8x128xf32, #tpu.memory_space<vmem>>, vector<1x8x128xf32>,
    %c3 = arith.constant 3 : index
    %c0_38 = arith.constant 0 : index
    %c0_39 = arith.constant 0 : index
    %51 = vector.load %arg1[%c3, %c0_38, %c0_39] : memref<12x8x128xf32, #tpu.memory_space<vmem>>, vector<1x8x128xf32>
    %52 = vector.shape_cast %51 : vector<1x8x128xf32> to vector<8x128xf32>
    %c0_40 = arith.constant 0 : index
    %c0_41 = arith.constant 0 : index
    %53 = vector.load %arg2[%c0_40, %c0_41] : memref<128x128xf32, #tpu.memory_space<vmem>>, vector<128x128xf32>
    %cst_42 = arith.constant dense<0.000000e+00> : vector<8x128xf32>
    %54 = tpu.matmul %47, %53, %cst_42 {dimension_numbers = #tpu.dot_dimension_numbers<[1], [0], [0], [1], [0, 0, 1, 1], [], []>} : vector<8x128xf32>, vector<128x128xf32>, vector<8x128xf32> -> vector<8x128xf32>
    %55 = arith.addf %52, %54 : vector<8x128xf32>
    %56 = math.tanh %55 : vector<8x128xf32>
    %c0_43 = arith.constant 0 : index
    %c0_44 = arith.constant 0 : index
    %57 = vector.load %arg3[%c0_43, %c0_44] : memref<128x128xf32, #tpu.memory_space<vmem>>, vector<128x128xf32>
    %cst_45 = arith.constant dense<0.000000e+00> : vector<8x128xf32>
    %58 = tpu.matmul %56, %57, %cst_45 {dimension_numbers = #tpu.dot_dimension_numbers<[1], [0], [0], [1], [0, 0, 1, 1], [], []>} : vector<8x128xf32>, vector<128x128xf32>, vector<8x128xf32> -> vector<8x128xf32>
    %c0_46 = arith.constant 0 : index
    %c0_47 = arith.constant 0 : index
    %59 = vector.load %arg4[%c0_46, %c0_47] : memref<1x128xf32, #tpu.memory_space<vmem>>, vector<1x128xf32>
    %60 = vector.broadcast %59 : vector<1x128xf32> to vector<8x128xf32>
    %61 = arith.addf %58, %60 : vector<8x128xf32>
    %cst_48 = arith.constant 0.000000e+00 : f32
    %62 = vector.broadcast %cst_48 : f32 to vector<8x128xf32>
    %63 = arith.cmpf ogt, %61, %62 : vector<8x128xf32>
    %64 = arith.extui %63 : vector<8x128xi1> to vector<8x128xi32>
    %65 = arith.sitofp %64 : vector<8x128xi32> to vector<8x128xf32>
    %c3_49 = arith.constant 3 : index
    %c0_50 = arith.constant 0 : index
    %c0_51 = arith.constant 0 : index
    %66 = vector.load %arg5[%c3_49, %c0_50, %c0_51] : memref<12x8x128xf32, #tpu.memory_space<vmem>>, vector<1x8x128xf32>
    %67 = vector.shape_cast %66 : vector<1x8x128xf32> to vector<8x128xf32>
    %68 = vector.shape_cast %65 : vector<8x128xf32> to vector<1x8x128xf32>
    tpu.vector_store %arg5[%c3_49, %c0_50, %c0_51], %68 {strides = array<i32>} : memref<12x8x128xf32, #tpu.memory_space<vmem>>, vector<1x8x128xf32>,
    %c4 = arith.constant 4 : index
    %c0_52 = arith.constant 0 : index
    %c0_53 = arith.constant 0 : index
    %69 = vector.load %arg1[%c4, %c0_52, %c0_53] : memref<12x8x128xf32, #tpu.memory_space<vmem>>, vector<1x8x128xf32>
    %70 = vector.shape_cast %69 : vector<1x8x128xf32> to vector<8x128xf32>
    %c0_54 = arith.constant 0 : index
    %c0_55 = arith.constant 0 : index
    %71 = vector.load %arg2[%c0_54, %c0_55] : memref<128x128xf32, #tpu.memory_space<vmem>>, vector<128x128xf32>
    %cst_56 = arith.constant dense<0.000000e+00> : vector<8x128xf32>
    %72 = tpu.matmul %65, %71, %cst_56 {dimension_numbers = #tpu.dot_dimension_numbers<[1], [0], [0], [1], [0, 0, 1, 1], [], []>} : vector<8x128xf32>, vector<128x128xf32>, vector<8x128xf32> -> vector<8x128xf32>
    %73 = arith.addf %70, %72 : vector<8x128xf32>
    %74 = math.tanh %73 : vector<8x128xf32>
    %c0_57 = arith.constant 0 : index
    %c0_58 = arith.constant 0 : index
    %75 = vector.load %arg3[%c0_57, %c0_58] : memref<128x128xf32, #tpu.memory_space<vmem>>, vector<128x128xf32>
    %cst_59 = arith.constant dense<0.000000e+00> : vector<8x128xf32>
    %76 = tpu.matmul %74, %75, %cst_59 {dimension_numbers = #tpu.dot_dimension_numbers<[1], [0], [0], [1], [0, 0, 1, 1], [], []>} : vector<8x128xf32>, vector<128x128xf32>, vector<8x128xf32> -> vector<8x128xf32>
    %c0_60 = arith.constant 0 : index
    %c0_61 = arith.constant 0 : index
    %77 = vector.load %arg4[%c0_60, %c0_61] : memref<1x128xf32, #tpu.memory_space<vmem>>, vector<1x128xf32>
    %78 = vector.broadcast %77 : vector<1x128xf32> to vector<8x128xf32>
    %79 = arith.addf %76, %78 : vector<8x128xf32>
    %cst_62 = arith.constant 0.000000e+00 : f32
    %80 = vector.broadcast %cst_62 : f32 to vector<8x128xf32>
    %81 = arith.cmpf ogt, %79, %80 : vector<8x128xf32>
    %82 = arith.extui %81 : vector<8x128xi1> to vector<8x128xi32>
    %83 = arith.sitofp %82 : vector<8x128xi32> to vector<8x128xf32>
    %c4_63 = arith.constant 4 : index
    %c0_64 = arith.constant 0 : index
    %c0_65 = arith.constant 0 : index
    %84 = vector.load %arg5[%c4_63, %c0_64, %c0_65] : memref<12x8x128xf32, #tpu.memory_space<vmem>>, vector<1x8x128xf32>
    %85 = vector.shape_cast %84 : vector<1x8x128xf32> to vector<8x128xf32>
    %86 = vector.shape_cast %83 : vector<8x128xf32> to vector<1x8x128xf32>
    tpu.vector_store %arg5[%c4_63, %c0_64, %c0_65], %86 {strides = array<i32>} : memref<12x8x128xf32, #tpu.memory_space<vmem>>, vector<1x8x128xf32>,
    %c5 = arith.constant 5 : index
    %c0_66 = arith.constant 0 : index
    %c0_67 = arith.constant 0 : index
    %87 = vector.load %arg1[%c5, %c0_66, %c0_67] : memref<12x8x128xf32, #tpu.memory_space<vmem>>, vector<1x8x128xf32>
    %88 = vector.shape_cast %87 : vector<1x8x128xf32> to vector<8x128xf32>
    %c0_68 = arith.constant 0 : index
    %c0_69 = arith.constant 0 : index
    %89 = vector.load %arg2[%c0_68, %c0_69] : memref<128x128xf32, #tpu.memory_space<vmem>>, vector<128x128xf32>
    %cst_70 = arith.constant dense<0.000000e+00> : vector<8x128xf32>
    %90 = tpu.matmul %83, %89, %cst_70 {dimension_numbers = #tpu.dot_dimension_numbers<[1], [0], [0], [1], [0, 0, 1, 1], [], []>} : vector<8x128xf32>, vector<128x128xf32>, vector<8x128xf32> -> vector<8x128xf32>
    %91 = arith.addf %88, %90 : vector<8x128xf32>
    %92 = math.tanh %91 : vector<8x128xf32>
    %c0_71 = arith.constant 0 : index
    %c0_72 = arith.constant 0 : index
    %93 = vector.load %arg3[%c0_71, %c0_72] : memref<128x128xf32, #tpu.memory_space<vmem>>, vector<128x128xf32>
    %cst_73 = arith.constant dense<0.000000e+00> : vector<8x128xf32>
    %94 = tpu.matmul %92, %93, %cst_73 {dimension_numbers = #tpu.dot_dimension_numbers<[1], [0], [0], [1], [0, 0, 1, 1], [], []>} : vector<8x128xf32>, vector<128x128xf32>, vector<8x128xf32> -> vector<8x128xf32>
    %c0_74 = arith.constant 0 : index
    %c0_75 = arith.constant 0 : index
    %95 = vector.load %arg4[%c0_74, %c0_75] : memref<1x128xf32, #tpu.memory_space<vmem>>, vector<1x128xf32>
    %96 = vector.broadcast %95 : vector<1x128xf32> to vector<8x128xf32>
    %97 = arith.addf %94, %96 : vector<8x128xf32>
    %cst_76 = arith.constant 0.000000e+00 : f32
    %98 = vector.broadcast %cst_76 : f32 to vector<8x128xf32>
    %99 = arith.cmpf ogt, %97, %98 : vector<8x128xf32>
    %100 = arith.extui %99 : vector<8x128xi1> to vector<8x128xi32>
    %101 = arith.sitofp %100 : vector<8x128xi32> to vector<8x128xf32>
    %c5_77 = arith.constant 5 : index
    %c0_78 = arith.constant 0 : index
    %c0_79 = arith.constant 0 : index
    %102 = vector.load %arg5[%c5_77, %c0_78, %c0_79] : memref<12x8x128xf32, #tpu.memory_space<vmem>>, vector<1x8x128xf32>
    %103 = vector.shape_cast %102 : vector<1x8x128xf32> to vector<8x128xf32>
    %104 = vector.shape_cast %101 : vector<8x128xf32> to vector<1x8x128xf32>
    tpu.vector_store %arg5[%c5_77, %c0_78, %c0_79], %104 {strides = array<i32>} : memref<12x8x128xf32, #tpu.memory_space<vmem>>, vector<1x8x128xf32>,
    %c6 = arith.constant 6 : index
    %c0_80 = arith.constant 0 : index
    %c0_81 = arith.constant 0 : index
    %105 = vector.load %arg1[%c6, %c0_80, %c0_81] : memref<12x8x128xf32, #tpu.memory_space<vmem>>, vector<1x8x128xf32>
    %106 = vector.shape_cast %105 : vector<1x8x128xf32> to vector<8x128xf32>
    %c0_82 = arith.constant 0 : index
    %c0_83 = arith.constant 0 : index
    %107 = vector.load %arg2[%c0_82, %c0_83] : memref<128x128xf32, #tpu.memory_space<vmem>>, vector<128x128xf32>
    %cst_84 = arith.constant dense<0.000000e+00> : vector<8x128xf32>
    %108 = tpu.matmul %101, %107, %cst_84 {dimension_numbers = #tpu.dot_dimension_numbers<[1], [0], [0], [1], [0, 0, 1, 1], [], []>} : vector<8x128xf32>, vector<128x128xf32>, vector<8x128xf32> -> vector<8x128xf32>
    %109 = arith.addf %106, %108 : vector<8x128xf32>
    %110 = math.tanh %109 : vector<8x128xf32>
    %c0_85 = arith.constant 0 : index
    %c0_86 = arith.constant 0 : index
    %111 = vector.load %arg3[%c0_85, %c0_86] : memref<128x128xf32, #tpu.memory_space<vmem>>, vector<128x128xf32>
    %cst_87 = arith.constant dense<0.000000e+00> : vector<8x128xf32>
    %112 = tpu.matmul %110, %111, %cst_87 {dimension_numbers = #tpu.dot_dimension_numbers<[1], [0], [0], [1], [0, 0, 1, 1], [], []>} : vector<8x128xf32>, vector<128x128xf32>, vector<8x128xf32> -> vector<8x128xf32>
    %c0_88 = arith.constant 0 : index
    %c0_89 = arith.constant 0 : index
    %113 = vector.load %arg4[%c0_88, %c0_89] : memref<1x128xf32, #tpu.memory_space<vmem>>, vector<1x128xf32>
    %114 = vector.broadcast %113 : vector<1x128xf32> to vector<8x128xf32>
    %115 = arith.addf %112, %114 : vector<8x128xf32>
    %cst_90 = arith.constant 0.000000e+00 : f32
    %116 = vector.broadcast %cst_90 : f32 to vector<8x128xf32>
    %117 = arith.cmpf ogt, %115, %116 : vector<8x128xf32>
    %118 = arith.extui %117 : vector<8x128xi1> to vector<8x128xi32>
    %119 = arith.sitofp %118 : vector<8x128xi32> to vector<8x128xf32>
    %c6_91 = arith.constant 6 : index
    %c0_92 = arith.constant 0 : index
    %c0_93 = arith.constant 0 : index
    %120 = vector.load %arg5[%c6_91, %c0_92, %c0_93] : memref<12x8x128xf32, #tpu.memory_space<vmem>>, vector<1x8x128xf32>
    %121 = vector.shape_cast %120 : vector<1x8x128xf32> to vector<8x128xf32>
    %122 = vector.shape_cast %119 : vector<8x128xf32> to vector<1x8x128xf32>
    tpu.vector_store %arg5[%c6_91, %c0_92, %c0_93], %122 {strides = array<i32>} : memref<12x8x128xf32, #tpu.memory_space<vmem>>, vector<1x8x128xf32>,
    %c7 = arith.constant 7 : index
    %c0_94 = arith.constant 0 : index
    %c0_95 = arith.constant 0 : index
    %123 = vector.load %arg1[%c7, %c0_94, %c0_95] : memref<12x8x128xf32, #tpu.memory_space<vmem>>, vector<1x8x128xf32>
    %124 = vector.shape_cast %123 : vector<1x8x128xf32> to vector<8x128xf32>
    %c0_96 = arith.constant 0 : index
    %c0_97 = arith.constant 0 : index
    %125 = vector.load %arg2[%c0_96, %c0_97] : memref<128x128xf32, #tpu.memory_space<vmem>>, vector<128x128xf32>
    %cst_98 = arith.constant dense<0.000000e+00> : vector<8x128xf32>
    %126 = tpu.matmul %119, %125, %cst_98 {dimension_numbers = #tpu.dot_dimension_numbers<[1], [0], [0], [1], [0, 0, 1, 1], [], []>} : vector<8x128xf32>, vector<128x128xf32>, vector<8x128xf32> -> vector<8x128xf32>
    %127 = arith.addf %124, %126 : vector<8x128xf32>
    %128 = math.tanh %127 : vector<8x128xf32>
    %c0_99 = arith.constant 0 : index
    %c0_100 = arith.constant 0 : index
    %129 = vector.load %arg3[%c0_99, %c0_100] : memref<128x128xf32, #tpu.memory_space<vmem>>, vector<128x128xf32>
    %cst_101 = arith.constant dense<0.000000e+00> : vector<8x128xf32>
    %130 = tpu.matmul %128, %129, %cst_101 {dimension_numbers = #tpu.dot_dimension_numbers<[1], [0], [0], [1], [0, 0, 1, 1], [], []>} : vector<8x128xf32>, vector<128x128xf32>, vector<8x128xf32> -> vector<8x128xf32>
    %c0_102 = arith.constant 0 : index
    %c0_103 = arith.constant 0 : index
    %131 = vector.load %arg4[%c0_102, %c0_103] : memref<1x128xf32, #tpu.memory_space<vmem>>, vector<1x128xf32>
    %132 = vector.broadcast %131 : vector<1x128xf32> to vector<8x128xf32>
    %133 = arith.addf %130, %132 : vector<8x128xf32>
    %cst_104 = arith.constant 0.000000e+00 : f32
    %134 = vector.broadcast %cst_104 : f32 to vector<8x128xf32>
    %135 = arith.cmpf ogt, %133, %134 : vector<8x128xf32>
    %136 = arith.extui %135 : vector<8x128xi1> to vector<8x128xi32>
    %137 = arith.sitofp %136 : vector<8x128xi32> to vector<8x128xf32>
    %c7_105 = arith.constant 7 : index
    %c0_106 = arith.constant 0 : index
    %c0_107 = arith.constant 0 : index
    %138 = vector.load %arg5[%c7_105, %c0_106, %c0_107] : memref<12x8x128xf32, #tpu.memory_space<vmem>>, vector<1x8x128xf32>
    %139 = vector.shape_cast %138 : vector<1x8x128xf32> to vector<8x128xf32>
    %140 = vector.shape_cast %137 : vector<8x128xf32> to vector<1x8x128xf32>
    tpu.vector_store %arg5[%c7_105, %c0_106, %c0_107], %140 {strides = array<i32>} : memref<12x8x128xf32, #tpu.memory_space<vmem>>, vector<1x8x128xf32>,
    %c8 = arith.constant 8 : index
    %c0_108 = arith.constant 0 : index
    %c0_109 = arith.constant 0 : index
    %141 = vector.load %arg1[%c8, %c0_108, %c0_109] : memref<12x8x128xf32, #tpu.memory_space<vmem>>, vector<1x8x128xf32>
    %142 = vector.shape_cast %141 : vector<1x8x128xf32> to vector<8x128xf32>
    %c0_110 = arith.constant 0 : index
    %c0_111 = arith.constant 0 : index
    %143 = vector.load %arg2[%c0_110, %c0_111] : memref<128x128xf32, #tpu.memory_space<vmem>>, vector<128x128xf32>
    %cst_112 = arith.constant dense<0.000000e+00> : vector<8x128xf32>
    %144 = tpu.matmul %137, %143, %cst_112 {dimension_numbers = #tpu.dot_dimension_numbers<[1], [0], [0], [1], [0, 0, 1, 1], [], []>} : vector<8x128xf32>, vector<128x128xf32>, vector<8x128xf32> -> vector<8x128xf32>
    %145 = arith.addf %142, %144 : vector<8x128xf32>
    %146 = math.tanh %145 : vector<8x128xf32>
    %c0_113 = arith.constant 0 : index
    %c0_114 = arith.constant 0 : index
    %147 = vector.load %arg3[%c0_113, %c0_114] : memref<128x128xf32, #tpu.memory_space<vmem>>, vector<128x128xf32>
    %cst_115 = arith.constant dense<0.000000e+00> : vector<8x128xf32>
    %148 = tpu.matmul %146, %147, %cst_115 {dimension_numbers = #tpu.dot_dimension_numbers<[1], [0], [0], [1], [0, 0, 1, 1], [], []>} : vector<8x128xf32>, vector<128x128xf32>, vector<8x128xf32> -> vector<8x128xf32>
    %c0_116 = arith.constant 0 : index
    %c0_117 = arith.constant 0 : index
    %149 = vector.load %arg4[%c0_116, %c0_117] : memref<1x128xf32, #tpu.memory_space<vmem>>, vector<1x128xf32>
    %150 = vector.broadcast %149 : vector<1x128xf32> to vector<8x128xf32>
    %151 = arith.addf %148, %150 : vector<8x128xf32>
    %cst_118 = arith.constant 0.000000e+00 : f32
    %152 = vector.broadcast %cst_118 : f32 to vector<8x128xf32>
    %153 = arith.cmpf ogt, %151, %152 : vector<8x128xf32>
    %154 = arith.extui %153 : vector<8x128xi1> to vector<8x128xi32>
    %155 = arith.sitofp %154 : vector<8x128xi32> to vector<8x128xf32>
    %c8_119 = arith.constant 8 : index
    %c0_120 = arith.constant 0 : index
    %c0_121 = arith.constant 0 : index
    %156 = vector.load %arg5[%c8_119, %c0_120, %c0_121] : memref<12x8x128xf32, #tpu.memory_space<vmem>>, vector<1x8x128xf32>
    %157 = vector.shape_cast %156 : vector<1x8x128xf32> to vector<8x128xf32>
    %158 = vector.shape_cast %155 : vector<8x128xf32> to vector<1x8x128xf32>
    tpu.vector_store %arg5[%c8_119, %c0_120, %c0_121], %158 {strides = array<i32>} : memref<12x8x128xf32, #tpu.memory_space<vmem>>, vector<1x8x128xf32>,
    %c9 = arith.constant 9 : index
    %c0_122 = arith.constant 0 : index
    %c0_123 = arith.constant 0 : index
    %159 = vector.load %arg1[%c9, %c0_122, %c0_123] : memref<12x8x128xf32, #tpu.memory_space<vmem>>, vector<1x8x128xf32>
    %160 = vector.shape_cast %159 : vector<1x8x128xf32> to vector<8x128xf32>
    %c0_124 = arith.constant 0 : index
    %c0_125 = arith.constant 0 : index
    %161 = vector.load %arg2[%c0_124, %c0_125] : memref<128x128xf32, #tpu.memory_space<vmem>>, vector<128x128xf32>
    %cst_126 = arith.constant dense<0.000000e+00> : vector<8x128xf32>
    %162 = tpu.matmul %155, %161, %cst_126 {dimension_numbers = #tpu.dot_dimension_numbers<[1], [0], [0], [1], [0, 0, 1, 1], [], []>} : vector<8x128xf32>, vector<128x128xf32>, vector<8x128xf32> -> vector<8x128xf32>
    %163 = arith.addf %160, %162 : vector<8x128xf32>
    %164 = math.tanh %163 : vector<8x128xf32>
    %c0_127 = arith.constant 0 : index
    %c0_128 = arith.constant 0 : index
    %165 = vector.load %arg3[%c0_127, %c0_128] : memref<128x128xf32, #tpu.memory_space<vmem>>, vector<128x128xf32>
    %cst_129 = arith.constant dense<0.000000e+00> : vector<8x128xf32>
    %166 = tpu.matmul %164, %165, %cst_129 {dimension_numbers = #tpu.dot_dimension_numbers<[1], [0], [0], [1], [0, 0, 1, 1], [], []>} : vector<8x128xf32>, vector<128x128xf32>, vector<8x128xf32> -> vector<8x128xf32>
    %c0_130 = arith.constant 0 : index
    %c0_131 = arith.constant 0 : index
    %167 = vector.load %arg4[%c0_130, %c0_131] : memref<1x128xf32, #tpu.memory_space<vmem>>, vector<1x128xf32>
    %168 = vector.broadcast %167 : vector<1x128xf32> to vector<8x128xf32>
    %169 = arith.addf %166, %168 : vector<8x128xf32>
    %cst_132 = arith.constant 0.000000e+00 : f32
    %170 = vector.broadcast %cst_132 : f32 to vector<8x128xf32>
    %171 = arith.cmpf ogt, %169, %170 : vector<8x128xf32>
    %172 = arith.extui %171 : vector<8x128xi1> to vector<8x128xi32>
    %173 = arith.sitofp %172 : vector<8x128xi32> to vector<8x128xf32>
    %c9_133 = arith.constant 9 : index
    %c0_134 = arith.constant 0 : index
    %c0_135 = arith.constant 0 : index
    %174 = vector.load %arg5[%c9_133, %c0_134, %c0_135] : memref<12x8x128xf32, #tpu.memory_space<vmem>>, vector<1x8x128xf32>
    %175 = vector.shape_cast %174 : vector<1x8x128xf32> to vector<8x128xf32>
    %176 = vector.shape_cast %173 : vector<8x128xf32> to vector<1x8x128xf32>
    tpu.vector_store %arg5[%c9_133, %c0_134, %c0_135], %176 {strides = array<i32>} : memref<12x8x128xf32, #tpu.memory_space<vmem>>, vector<1x8x128xf32>,
    %c10 = arith.constant 10 : index
    %c0_136 = arith.constant 0 : index
    %c0_137 = arith.constant 0 : index
    %177 = vector.load %arg1[%c10, %c0_136, %c0_137] : memref<12x8x128xf32, #tpu.memory_space<vmem>>, vector<1x8x128xf32>
    %178 = vector.shape_cast %177 : vector<1x8x128xf32> to vector<8x128xf32>
    %c0_138 = arith.constant 0 : index
    %c0_139 = arith.constant 0 : index
    %179 = vector.load %arg2[%c0_138, %c0_139] : memref<128x128xf32, #tpu.memory_space<vmem>>, vector<128x128xf32>
    %cst_140 = arith.constant dense<0.000000e+00> : vector<8x128xf32>
    %180 = tpu.matmul %173, %179, %cst_140 {dimension_numbers = #tpu.dot_dimension_numbers<[1], [0], [0], [1], [0, 0, 1, 1], [], []>} : vector<8x128xf32>, vector<128x128xf32>, vector<8x128xf32> -> vector<8x128xf32>
    %181 = arith.addf %178, %180 : vector<8x128xf32>
    %182 = math.tanh %181 : vector<8x128xf32>
    %c0_141 = arith.constant 0 : index
    %c0_142 = arith.constant 0 : index
    %183 = vector.load %arg3[%c0_141, %c0_142] : memref<128x128xf32, #tpu.memory_space<vmem>>, vector<128x128xf32>
    %cst_143 = arith.constant dense<0.000000e+00> : vector<8x128xf32>
    %184 = tpu.matmul %182, %183, %cst_143 {dimension_numbers = #tpu.dot_dimension_numbers<[1], [0], [0], [1], [0, 0, 1, 1], [], []>} : vector<8x128xf32>, vector<128x128xf32>, vector<8x128xf32> -> vector<8x128xf32>
    %c0_144 = arith.constant 0 : index
    %c0_145 = arith.constant 0 : index
    %185 = vector.load %arg4[%c0_144, %c0_145] : memref<1x128xf32, #tpu.memory_space<vmem>>, vector<1x128xf32>
    %186 = vector.broadcast %185 : vector<1x128xf32> to vector<8x128xf32>
    %187 = arith.addf %184, %186 : vector<8x128xf32>
    %cst_146 = arith.constant 0.000000e+00 : f32
    %188 = vector.broadcast %cst_146 : f32 to vector<8x128xf32>
    %189 = arith.cmpf ogt, %187, %188 : vector<8x128xf32>
    %190 = arith.extui %189 : vector<8x128xi1> to vector<8x128xi32>
    %191 = arith.sitofp %190 : vector<8x128xi32> to vector<8x128xf32>
    %c10_147 = arith.constant 10 : index
    %c0_148 = arith.constant 0 : index
    %c0_149 = arith.constant 0 : index
    %192 = vector.load %arg5[%c10_147, %c0_148, %c0_149] : memref<12x8x128xf32, #tpu.memory_space<vmem>>, vector<1x8x128xf32>
    %193 = vector.shape_cast %192 : vector<1x8x128xf32> to vector<8x128xf32>
    %194 = vector.shape_cast %191 : vector<8x128xf32> to vector<1x8x128xf32>
    tpu.vector_store %arg5[%c10_147, %c0_148, %c0_149], %194 {strides = array<i32>} : memref<12x8x128xf32, #tpu.memory_space<vmem>>, vector<1x8x128xf32>,
    %c11 = arith.constant 11 : index
    %c0_150 = arith.constant 0 : index
    %c0_151 = arith.constant 0 : index
    %195 = vector.load %arg1[%c11, %c0_150, %c0_151] : memref<12x8x128xf32, #tpu.memory_space<vmem>>, vector<1x8x128xf32>
    %196 = vector.shape_cast %195 : vector<1x8x128xf32> to vector<8x128xf32>
    %c0_152 = arith.constant 0 : index
    %c0_153 = arith.constant 0 : index
    %197 = vector.load %arg2[%c0_152, %c0_153] : memref<128x128xf32, #tpu.memory_space<vmem>>, vector<128x128xf32>
    %cst_154 = arith.constant dense<0.000000e+00> : vector<8x128xf32>
    %198 = tpu.matmul %191, %197, %cst_154 {dimension_numbers = #tpu.dot_dimension_numbers<[1], [0], [0], [1], [0, 0, 1, 1], [], []>} : vector<8x128xf32>, vector<128x128xf32>, vector<8x128xf32> -> vector<8x128xf32>
    %199 = arith.addf %196, %198 : vector<8x128xf32>
    %200 = math.tanh %199 : vector<8x128xf32>
    %c0_155 = arith.constant 0 : index
    %c0_156 = arith.constant 0 : index
    %201 = vector.load %arg3[%c0_155, %c0_156] : memref<128x128xf32, #tpu.memory_space<vmem>>, vector<128x128xf32>
    %cst_157 = arith.constant dense<0.000000e+00> : vector<8x128xf32>
    %202 = tpu.matmul %200, %201, %cst_157 {dimension_numbers = #tpu.dot_dimension_numbers<[1], [0], [0], [1], [0, 0, 1, 1], [], []>} : vector<8x128xf32>, vector<128x128xf32>, vector<8x128xf32> -> vector<8x128xf32>
    %c0_158 = arith.constant 0 : index
    %c0_159 = arith.constant 0 : index
    %203 = vector.load %arg4[%c0_158, %c0_159] : memref<1x128xf32, #tpu.memory_space<vmem>>, vector<1x128xf32>
    %204 = vector.broadcast %203 : vector<1x128xf32> to vector<8x128xf32>
    %205 = arith.addf %202, %204 : vector<8x128xf32>
    %cst_160 = arith.constant 0.000000e+00 : f32
    %206 = vector.broadcast %cst_160 : f32 to vector<8x128xf32>
    %207 = arith.cmpf ogt, %205, %206 : vector<8x128xf32>
    %208 = arith.extui %207 : vector<8x128xi1> to vector<8x128xi32>
    %209 = arith.sitofp %208 : vector<8x128xi32> to vector<8x128xf32>
    %c11_161 = arith.constant 11 : index
    %c0_162 = arith.constant 0 : index
    %c0_163 = arith.constant 0 : index
    %210 = vector.load %arg5[%c11_161, %c0_162, %c0_163] : memref<12x8x128xf32, #tpu.memory_space<vmem>>, vector<1x8x128xf32>
    %211 = vector.shape_cast %210 : vector<1x8x128xf32> to vector<8x128xf32>
    %212 = vector.shape_cast %209 : vector<8x128xf32> to vector<1x8x128xf32>
    tpu.vector_store %arg5[%c11_161, %c0_162, %c0_163], %212 {strides = array<i32>} : memref<12x8x128xf32, #tpu.memory_space<vmem>>, vector<1x8x128xf32>,
    return
  }
  func.func @transform_0(%arg0: i32) -> (i32, i32, i32) {
    %c0_i32 = arith.constant 0 : i32
    %c0_i32_0 = arith.constant 0 : i32
    %c0_i32_1 = arith.constant 0 : i32
    %c0_i32_2 = arith.constant 0 : i32
    return %c0_i32, %c0_i32_0, %c0_i32_1 : i32, i32, i32
  }
  func.func @transform_1(%arg0: i32) -> (i32, i32) {
    %c0_i32 = arith.constant 0 : i32
    %c0_i32_0 = arith.constant 0 : i32
    %c0_i32_1 = arith.constant 0 : i32
    return %c0_i32, %c0_i32_0 : i32, i32
  }
  func.func @transform_2(%arg0: i32) -> (i32, i32) {
    %c0_i32 = arith.constant 0 : i32
    %c0_i32_0 = arith.constant 0 : i32
    %c0_i32_1 = arith.constant 0 : i32
    return %c0_i32, %c0_i32_0 : i32, i32
  }
  func.func @transform_3(%arg0: i32) -> (i32, i32) {
    %c0_i32 = arith.constant 0 : i32
    %c0_i32_0 = arith.constant 0 : i32
    %c0_i32_1 = arith.constant 0 : i32
    return %c0_i32, %c0_i32_0 : i32, i32
  }
  func.func @transform_4(%arg0: i32) -> (i32, i32, i32) {
    %c0_i32 = arith.constant 0 : i32
    %c0_i32_0 = arith.constant 0 : i32
    %c0_i32_1 = arith.constant 0 : i32
    %c0_i32_2 = arith.constant 0 : i32
    return %c0_i32, %c0_i32_0, %c0_i32_1 : i32, i32, i32
  }
}

</mosaic_0001>

<llo_original>
// kernel: _forward_device.1
$region0: #{_forward_device.1}
  #allocation0 [shape = 'u32[]', space=smem, size = 0x4, offset = 0x4, fixed_abs, tag = 'smem constant byte address 0x4 - core index']
  #allocation1 [shape = 'u32[144,128]{1,0:T(1,128)}', space=vmem, size = 0x12000, scoped, tag = 'internal scratch']
  %s0 = inlined_call_operand.vmem [shape: f32[12,8,128], index: 0, kind: input, shape index: {}]
  %s1 = inlined_call_operand.vmem [shape: f32[128,128], index: 1, kind: input, shape index: {}]
  %s2 = inlined_call_operand.vmem [shape: f32[128,128], index: 2, kind: input, shape index: {}]
  %s3 = inlined_call_operand.vmem [shape: f32[1,128], index: 3, kind: input, shape index: {}]
  %s4 = inlined_call_operand.vmem [shape: f32[12,8,128], index: 4, kind: output, shape index: {}]
  %s5 = sld [smem:[#allocation0]]
  $region26: #{_forward_device.1} parent=0
    _
  %s7 = ssub.s32 1, %s5
  %s8 = scalar_select 0, %s7, %s5
  // Predicated region
  $region2: #{_forward_device.1} parent=0 // pred_check
    _
  $region3: #{_forward_device.1} parent=0 // pred_check_branch
    %10 = sbr.rel (0) target = $region5
  $region4: #{_forward_device.1} parent=0 // pred_region
    _
  $region5: #{_forward_device.1} parent=0 // pred_fallthru
    _
  // Predicated region
  $region6: #{_forward_device.1} parent=0 // pred_check
    _
  $region7: #{_forward_device.1} parent=0 // pred_check_branch
    %12 = sbr.rel (0) target = $region9
  $region8: #{_forward_device.1} parent=0 // pred_region
    _
  $region9: #{_forward_device.1} parent=0 // pred_fallthru
    _
  // Predicated region
  $region10: #{_forward_device.1} parent=0 // pred_check
    _
  $region11: #{_forward_device.1} parent=0 // pred_check_branch
    %14 = sbr.rel (0) target = $region13
  $region12: #{_forward_device.1} parent=0 // pred_region
    _
  $region13: #{_forward_device.1} parent=0 // pred_fallthru
    _
  // Predicated region
  $region14: #{_forward_device.1} parent=0 // pred_check
    _
  $region15: #{_forward_device.1} parent=0 // pred_check_branch
    %16 = sbr.rel (0) target = $region17
  $region16: #{_forward_device.1} parent=0 // pred_region
    _
  $region17: #{_forward_device.1} parent=0 // pred_fallthru
    _
  %v17 = vld [vmem:[%s0] sm:$0xff]
  %v18 = vtanh.pop %v17
  %v19 = vld [vmem:[%s2] sm:$0xff]
  %v20 = vld [vmem:[%s2 + $0x8] sm:$0xff]
  %v21 = vld [vmem:[%s2 + $0x10] sm:$0xff]
  %v22 = vld [vmem:[%s2 + $0x18] sm:$0xff]
  %v23 = vld [vmem:[%s2 + $0x20] sm:$0xff]
  %v24 = vld [vmem:[%s2 + $0x28] sm:$0xff]
  %v25 = vld [vmem:[%s2 + $0x30] sm:$0xff]
  %v26 = vld [vmem:[%s2 + $0x38] sm:$0xff]
  %v27 = vld [vmem:[%s2 + $0x40] sm:$0xff]
  %v28 = vld [vmem:[%s2 + $0x48] sm:$0xff]
  %v29 = vld [vmem:[%s2 + $0x50] sm:$0xff]
  %v30 = vld [vmem:[%s2 + $0x58] sm:$0xff]
  %v31 = vld [vmem:[%s2 + $0x60] sm:$0xff]
  %v32 = vld [vmem:[%s2 + $0x68] sm:$0xff]
  %v33 = vld [vmem:[%s2 + $0x70] sm:$0xff]
  %v34 = vld [vmem:[%s2 + $0x78] sm:$0xff]
  %v35 = vld [vmem:[%s3] sm:$0x1]
  %v37 = vlaneseq
  %v38 = vshrl.u32 %v37, 7
  %v39 = vsub.s32 0, %v38
  %v40 = vrot.slane %v35, %v39
  %42 = vmatprep.subr.mxu0 0.0
  %43 = vmatpush1.msra.mxu0 %v19
  %44 = vmatprep.subr.mxu0 0.0
  %45 = vmatpush1.msra.mxu0 %v20
  %46 = vmatprep.subr.mxu0 0.0
  %47 = vmatpush1.msra.mxu0 %v21
  %48 = vmatprep.subr.mxu0 0.0
  %49 = vmatpush1.msra.mxu0 %v22
  %50 = vmatprep.subr.mxu0 0.0
  %51 = vmatpush1.msra.mxu0 %v23
  %52 = vmatprep.subr.mxu0 0.0
  %53 = vmatpush1.msra.mxu0 %v24
  %54 = vmatprep.subr.mxu0 0.0
  %55 = vmatpush1.msra.mxu0 %v25
  %56 = vmatprep.subr.mxu0 0.0
  %57 = vmatpush1.msra.mxu0 %v26
  %58 = vmatprep.subr.mxu0 0.0
  %59 = vmatpush1.msra.mxu0 %v27
  %60 = vmatprep.subr.mxu0 0.0
  %61 = vmatpush1.msra.mxu0 %v28
  %62 = vmatprep.subr.mxu0 0.0
  %63 = vmatpush1.msra.mxu0 %v29
  %64 = vmatprep.subr.mxu0 0.0
  %65 = vmatpush1.msra.mxu0 %v30
  %66 = vmatprep.subr.mxu0 0.0
  %67 = vmatpush1.msra.mxu0 %v31
  %68 = vmatprep.subr.mxu0 0.0
  %69 = vmatpush1.msra.mxu0 %v32
  %70 = vmatprep.subr.mxu0 0.0
  %71 = vmatpush1.msra.mxu0 %v33
  %72 = vmatprep.subr.mxu0 0.0
  %73 = vmatpush1.msra.mxu0 %v34
  %74 = vmatprep.subr.mxu0 0.0
  %75 = vmatpush1.msra.mxu0 0.0
  %76 = vmatprep.subr.mxu0 0.0
  %77 = vmatpush1.msra.mxu0 0.0
  %78 = vmatprep.subr.mxu0 0.0
  %79 = vmatpush1.msra.mxu0 0.0
  %80 = vmatprep.subr.mxu0 0.0
  %81 = vmatpush1.msra.mxu0 0.0
  %82 = vmatprep.subr.mxu0 0.0
  %83 = vmatpush1.msra.mxu0 0.0
  %84 = vmatprep.subr.mxu0 0.0
  %85 = vmatpush1.msra.mxu0 0.0
  %86 = vmatprep.subr.mxu0 0.0
  %87 = vmatpush1.msra.mxu0 0.0
  %88 = vmatprep.subr.mxu0 0.0
  %89 = vmatpush1.msra.mxu0 0.0
  %90 = vmatprep.subr.mxu0 0.0
  %91 = vmatpush1.msra.mxu0 0.0
  %92 = vmatprep.subr.mxu0 0.0
  %93 = vmatpush1.msra.mxu0 0.0
  %94 = vmatprep.subr.mxu0 0.0
  %95 = vmatpush1.msra.mxu0 0.0
  %96 = vmatprep.subr.mxu0 0.0
  %97 = vmatpush1.msra.mxu0 0.0
  %98 = vmatprep.subr.mxu0 0.0
  %99 = vmatpush1.msra.mxu0 0.0
  %100 = vmatprep.subr.mxu0 0.0
  %101 = vmatpush1.msra.mxu0 0.0
  %102 = vmatprep.subr.mxu0 0.0
  %103 = vmatpush1.msra.mxu0 0.0
  %104 = vmatprep.subr.mxu0 0.0
  %105 = vmatpush1.msra.mxu0 0.0
  %106 = vmatprep.mubr.f32.mxu0 0.0
  %107 = vmatmul.mubr.f32.gmra.mrb[0].mxu0 %v18
  %v108 = vpop.f32.mrb[0].mxu0
  %v109 = vadd.f32 %v40, %v108
  %v110 = vpop.f32.mrb[0].mxu0
  %111 = vdwg.mxu0
  %vm112 = vcmp.gt.f32.partialorder %v109, 0.0
  %v113 = vsel %vm112, 1, 0
  %v114 = vcvt.s32.f32 %v113
  %115 = vst [vmem:[%s4] sm:$0xff] %v114
  %s116 = scalar_lea.vmem %s0, 8
  %v117 = vld [vmem:[%s116] sm:$0xff]
  %v118 = vld [vmem:[%s1] sm:$0xff]
  %v119 = vld [vmem:[%s1 + $0x8] sm:$0xff]
  %v120 = vld [vmem:[%s1 + $0x10] sm:$0xff]
  %v121 = vld [vmem:[%s1 + $0x18] sm:$0xff]
  %v122 = vld [vmem:[%s1 + $0x20] sm:$0xff]
  %v123 = vld [vmem:[%s1 + $0x28] sm:$0xff]
  %v124 = vld [vmem:[%s1 + $0x30] sm:$0xff]
  %v125 = vld [vmem:[%s1 + $0x38] sm:$0xff]
  %v126 = vld [vmem:[%s1 + $0x40] sm:$0xff]
  %v127 = vld [vmem:[%s1 + $0x48] sm:$0xff]
  %v128 = vld [vmem:[%s1 + $0x50] sm:$0xff]
  %v129 = vld [vmem:[%s1 + $0x58] sm:$0xff]
  %v130 = vld [vmem:[%s1 + $0x60] sm:$0xff]
  %v131 = vld [vmem:[%s1 + $0x68] sm:$0xff]
  %v132 = vld [vmem:[%s1 + $0x70] sm:$0xff]
  %v133 = vld [vmem:[%s1 + $0x78] sm:$0xff]
  %134 = vmatprep.subr.mxu0 0.0
  %135 = vmatpush1.msra.mxu0 %v118
  %136 = vmatprep.subr.mxu0 0.0
  %137 = vmatpush1.msra.mxu0 %v119
  %138 = vmatprep.subr.mxu0 0.0
  %139 = vmatpush1.msra.mxu0 %v120
  %140 = vmatprep.subr.mxu0 0.0
  %141 = vmatpush1.msra.mxu0 %v121
  %142 = vmatprep.subr.mxu0 0.0
  %143 = vmatpush1.msra.mxu0 %v122
  %144 = vmatprep.subr.mxu0 0.0
  %145 = vmatpush1.msra.mxu0 %v123
  %146 = vmatprep.subr.mxu0 0.0
  %147 = vmatpush1.msra.mxu0 %v124
  %148 = vmatprep.subr.mxu0 0.0
  %149 = vmatpush1.msra.mxu0 %v125
  %150 = vmatprep.subr.mxu0 0.0
  %151 = vmatpush1.msra.mxu0 %v126
  %152 = vmatprep.subr.mxu0 0.0
  %153 = vmatpush1.msra.mxu0 %v127
  %154 = vmatprep.subr.mxu0 0.0
  %155 = vmatpush1.msra.mxu0 %v128
  %156 = vmatprep.subr.mxu0 0.0
  %157 = vmatpush1.msra.mxu0 %v129
  %158 = vmatprep.subr.mxu0 0.0
  %159 = vmatpush1.msra.mxu0 %v130
  %160 = vmatprep.subr.mxu0 0.0
  %161 = vmatpush1.msra.mxu0 %v131
  %162 = vmatprep.subr.mxu0 0.0
  %163 = vmatpush1.msra.mxu0 %v132
  %164 = vmatprep.subr.mxu0 0.0
  %165 = vmatpush1.msra.mxu0 %v133
  %166 = vmatprep.subr.mxu0 0.0
  %167 = vmatpush1.msra.mxu0 0.0
  %168 = vmatprep.subr.mxu0 0.0
  %169 = vmatpush1.msra.mxu0 0.0
  %170 = vmatprep.subr.mxu0 0.0
  %171 = vmatpush1.msra.mxu0 0.0
  %172 = vmatprep.subr.mxu0 0.0
  %173 = vmatpush1.msra.mxu0 0.0
  %174 = vmatprep.subr.mxu0 0.0
  %175 = vmatpush1.msra.mxu0 0.0
  %176 = vmatprep.subr.mxu0 0.0
  %177 = vmatpush1.msra.mxu0 0.0
  %178 = vmatprep.subr.mxu0 0.0
  %179 = vmatpush1.msra.mxu0 0.0
  %180 = vmatprep.subr.mxu0 0.0
  %181 = vmatpush1.msra.mxu0 0.0
  %182 = vmatprep.subr.mxu0 0.0
  %183 = vmatpush1.msra.mxu0 0.0
  %184 = vmatprep.subr.mxu0 0.0
  %185 = vmatpush1.msra.mxu0 0.0
  %186 = vmatprep.subr.mxu0 0.0
  %187 = vmatpush1.msra.mxu0 0.0
  %188 = vmatprep.subr.mxu0 0.0
  %189 = vmatpush1.msra.mxu0 0.0
  %190 = vmatprep.subr.mxu0 0.0
  %191 = vmatpush1.msra.mxu0 0.0
  %192 = vmatprep.subr.mxu0 0.0
  %193 = vmatpush1.msra.mxu0 0.0
  %194 = vmatprep.subr.mxu0 0.0
  %195 = vmatpush1.msra.mxu0 0.0
  %196 = vmatprep.subr.mxu0 0.0
  %197 = vmatpush1.msra.mxu0 0.0
  %198 = vmatprep.mubr.f32.mxu0 0.0
  %199 = vmatmul.mubr.f32.gmra.mrb[0].mxu0 %v114
  %v200 = vpop.f32.mrb[0].mxu0
  %v201 = vadd.f32 0.0, %v200
  %v202 = vpop.f32.mrb[0].mxu0
  %203 = vdwg.mxu0
  %v204 = vadd.f32 %v117, %v201
  %v205 = vtanh.pop %v204
  %v206 = vld [vmem:[%s2] sm:$0xff]
  %v207 = vld [vmem:[%s2 + $0x8] sm:$0xff]
  %v208 = vld [vmem:[%s2 + $0x10] sm:$0xff]
  %v209 = vld [vmem:[%s2 + $0x18] sm:$0xff]
  %v210 = vld [vmem:[%s2 + $0x20] sm:$0xff]
  %v211 = vld [vmem:[%s2 + $0x28] sm:$0xff]
  %v212 = vld [vmem:[%s2 + $0x30] sm:$0xff]
  %v213 = vld [vmem:[%s2 + $0x38] sm:$0xff]
  %v214 = vld [vmem:[%s2 + $0x40] sm:$0xff]
  %v215 = vld [vmem:[%s2 + $0x48] sm:$0xff]
  %v216 = vld [vmem:[%s2 + $0x50] sm:$0xff]
  %v217 = vld [vmem:[%s2 + $0x58] sm:$0xff]
  %v218 = vld [vmem:[%s2 + $0x60] sm:$0xff]
  %v219 = vld [vmem:[%s2 + $0x68] sm:$0xff]
  %v220 = vld [vmem:[%s2 + $0x70] sm:$0xff]
  %v221 = vld [vmem:[%s2 + $0x78] sm:$0xff]
  %v222 = vld [vmem:[%s3] sm:$0x1]
  %v224 = vlaneseq
  %v225 = vshrl.u32 %v224, 7
  %v226 = vsub.s32 0, %v225
  %v227 = vrot.slane %v222, %v226
  %229 = vmatprep.subr.mxu0 0.0
  %230 = vmatpush1.msra.mxu0 %v206
  %231 = vmatprep.subr.mxu0 0.0
  %232 = vmatpush1.msra.mxu0 %v207
  %233 = vmatprep.subr.mxu0 0.0
  %234 = vmatpush1.msra.mxu0 %v208
  %235 = vmatprep.subr.mxu0 0.0
  %236 = vmatpush1.msra.mxu0 %v209
  %237 = vmatprep.subr.mxu0 0.0
  %238 = vmatpush1.msra.mxu0 %v210
  %239 = vmatprep.subr.mxu0 0.0
  %240 = vmatpush1.msra.mxu0 %v211
  %241 = vmatprep.subr.mxu0 0.0
  %242 = vmatpush1.msra.mxu0 %v212
  %243 = vmatprep.subr.mxu0 0.0
  %244 = vmatpush1.msra.mxu0 %v213
  %245 = vmatprep.subr.mxu0 0.0
  %246 = vmatpush1.msra.mxu0 %v214
  %247 = vmatprep.subr.mxu0 0.0
  %248 = vmatpush1.msra.mxu0 %v215
  %249 = vmatprep.subr.mxu0 0.0
  %250 = vmatpush1.msra.mxu0 %v216
  %251 = vmatprep.subr.mxu0 0.0
  %252 = vmatpush1.msra.mxu0 %v217
  %253 = vmatprep.subr.mxu0 0.0
  %254 = vmatpush1.msra.mxu0 %v218
  %255 = vmatprep.subr.mxu0 0.0
  %256 = vmatpush1.msra.mxu0 %v219
  %257 = vmatprep.subr.mxu0 0.0
  %258 = vmatpush1.msra.mxu0 %v220
  %259 = vmatprep.subr.mxu0 0.0
  %260 = vmatpush1.msra.mxu0 %v221
  %261 = vmatprep.subr.mxu0 0.0
  %262 = vmatpush1.msra.mxu0 0.0
  %263 = vmatprep.subr.mxu0 0.0
  %264 = vmatpush1.msra.mxu0 0.0
  %265 = vmatprep.subr.mxu0 0.0
  %266 = vmatpush1.msra.mxu0 0.0
  %267 = vmatprep.subr.mxu0 0.0
  %268 = vmatpush1.msra.mxu0 0.0
  %269 = vmatprep.subr.mxu0 0.0
  %270 = vmatpush1.msra.mxu0 0.0
  %271 = vmatprep.subr.mxu0 0.0
  %272 = vmatpush1.msra.mxu0 0.0
  %273 = vmatprep.subr.mxu0 0.0
  %274 = vmatpush1.msra.mxu0 0.0
  %275 = vmatprep.subr.mxu0 0.0
  %276 = vmatpush1.msra.mxu0 0.0
  %277 = vmatprep.subr.mxu0 0.0
  %278 = vmatpush1.msra.mxu0 0.0
  %279 = vmatprep.subr.mxu0 0.0
  %280 = vmatpush1.msra.mxu0 0.0
  %281 = vmatprep.subr.mxu0 0.0
  %282 = vmatpush1.msra.mxu0 0.0
  %283 = vmatprep.subr.mxu0 0.0
  %284 = vmatpush1.msra.mxu0 0.0
  %285 = vmatprep.subr.mxu0 0.0
  %286 = vmatpush1.msra.mxu0 0.0
  %287 = vmatprep.subr.mxu0 0.0
  %288 = vmatpush1.msra.mxu0 0.0
  %289 = vmatprep.subr.mxu0 0.0
  %290 = vmatpush1.msra.mxu0 0.0
  %291 = vmatprep.subr.mxu0 0.0
  %292 = vmatpush1.msra.mxu0 0.0
  %293 = vmatprep.mubr.f32.mxu0 0.0
  %294 = vmatmul.mubr.f32.gmra.mrb[0].mxu0 %v205
  %v295 = vpop.f32.mrb[0].mxu0
  %v296 = vadd.f32 %v227, %v295
  %v297 = vpop.f32.mrb[0].mxu0
  %298 = vdwg.mxu0
  %vm299 = vcmp.gt.f32.partialorder %v296, 0.0
  %v300 = vsel %vm299, 1, 0
  %v301 = vcvt.s32.f32 %v300
  %s302 = scalar_lea.vmem %s4, 8
  %303 = vst [vmem:[%s302] sm:$0xff] %v301
  %s304 = scalar_lea.vmem %s0, 16
  %v305 = vld [vmem:[%s304] sm:$0xff]
  %v306 = vld [vmem:[%s1] sm:$0xff]
  %v307 = vld [vmem:[%s1 + $0x8] sm:$0xff]
  %v308 = vld [vmem:[%s1 + $0x10] sm:$0xff]
  %v309 = vld [vmem:[%s1 + $0x18] sm:$0xff]
  %v310 = vld [vmem:[%s1 + $0x20] sm:$0xff]
  %v311 = vld [vmem:[%s1 + $0x28] sm:$0xff]
  %v312 = vld [vmem:[%s1 + $0x30] sm:$0xff]
  %v313 = vld [vmem:[%s1 + $0x38] sm:$0xff]
  %v314 = vld [vmem:[%s1 + $0x40] sm:$0xff]
  %v315 = vld [vmem:[%s1 + $0x48] sm:$0xff]
  %v316 = vld [vmem:[%s1 + $0x50] sm:$0xff]
  %v317 = vld [vmem:[%s1 + $0x58] sm:$0xff]
  %v318 = vld [vmem:[%s1 + $0x60] sm:$0xff]
  %v319 = vld [vmem:[%s1 + $0x68] sm:$0xff]
  %v320 = vld [vmem:[%s1 + $0x70] sm:$0xff]
  %v321 = vld [vmem:[%s1 + $0x78] sm:$0xff]
  %322 = vmatprep.subr.mxu0 0.0
  %323 = vmatpush1.msra.mxu0 %v306
  %324 = vmatprep.subr.mxu0 0.0
  %325 = vmatpush1.msra.mxu0 %v307
  %326 = vmatprep.subr.mxu0 0.0
  %327 = vmatpush1.msra.mxu0 %v308
  %328 = vmatprep.subr.mxu0 0.0
  %329 = vmatpush1.msra.mxu0 %v309
  %330 = vmatprep.subr.mxu0 0.0
  %331 = vmatpush1.msra.mxu0 %v310
  %332 = vmatprep.subr.mxu0 0.0
  %333 = vmatpush1.msra.mxu0 %v311
  %334 = vmatprep.subr.mxu0 0.0
  %335 = vmatpush1.msra.mxu0 %v312
  %336 = vmatprep.subr.mxu0 0.0
  %337 = vmatpush1.msra.mxu0 %v313
  %338 = vmatprep.subr.mxu0 0.0
  %339 = vmatpush1.msra.mxu0 %v314
  %340 = vmatprep.subr.mxu0 0.0
  %341 = vmatpush1.msra.mxu0 %v315
  %342 = vmatprep.subr.mxu0 0.0
  %343 = vmatpush1.msra.mxu0 %v316
  %344 = vmatprep.subr.mxu0 0.0
  %345 = vmatpush1.msra.mxu0 %v317
  %346 = vmatprep.subr.mxu0 0.0
  %347 = vmatpush1.msra.mxu0 %v318
  %348 = vmatprep.subr.mxu0 0.0
  %349 = vmatpush1.msra.mxu0 %v319
  %350 = vmatprep.subr.mxu0 0.0
  %351 = vmatpush1.msra.mxu0 %v320
  %352 = vmatprep.subr.mxu0 0.0
  %353 = vmatpush1.msra.mxu0 %v321
  %354 = vmatprep.subr.mxu0 0.0
  %355 = vmatpush1.msra.mxu0 0.0
  %356 = vmatprep.subr.mxu0 0.0
  %357 = vmatpush1.msra.mxu0 0.0
  %358 = vmatprep.subr.mxu0 0.0
  %359 = vmatpush1.msra.mxu0 0.0
  %360 = vmatprep.subr.mxu0 0.0
  %361 = vmatpush1.msra.mxu0 0.0
  %362 = vmatprep.subr.mxu0 0.0
  %363 = vmatpush1.msra.mxu0 0.0
  %364 = vmatprep.subr.mxu0 0.0
  %365 = vmatpush1.msra.mxu0 0.0
  %366 = vmatprep.subr.mxu0 0.0
  %367 = vmatpush1.msra.mxu0 0.0
  %368 = vmatprep.subr.mxu0 0.0
  %369 = vmatpush1.msra.mxu0 0.0
  %370 = vmatprep.subr.mxu0 0.0
  %371 = vmatpush1.msra.mxu0 0.0
  %372 = vmatprep.subr.mxu0 0.0
  %373 = vmatpush1.msra.mxu0 0.0
  %374 = vmatprep.subr.mxu0 0.0
  %375 = vmatpush1.msra.mxu0 0.0
  %376 = vmatprep.subr.mxu0 0.0
  %377 = vmatpush1.msra.mxu0 0.0
  %378 = vmatprep.subr.mxu0 0.0
  %379 = vmatpush1.msra.mxu0 0.0
  %380 = vmatprep.subr.mxu0 0.0
  %381 = vmatpush1.msra.mxu0 0.0
  %382 = vmatprep.subr.mxu0 0.0
  %383 = vmatpush1.msra.mxu0 0.0
  %384 = vmatprep.subr.mxu0 0.0
  %385 = vmatpush1.msra.mxu0 0.0
  %386 = vmatprep.mubr.f32.mxu0 0.0
  %387 = vmatmul.mubr.f32.gmra.mrb[0].mxu0 %v301
  %v388 = vpop.f32.mrb[0].mxu0
  %v389 = vadd.f32 0.0, %v388
  %v390 = vpop.f32.mrb[0].mxu0
  %391 = vdwg.mxu0
  %v392 = vadd.f32 %v305, %v389
  %v393 = vtanh.pop %v392
  %v394 = vld [vmem:[%s2] sm:$0xff]
  %v395 = vld [vmem:[%s2 + $0x8] sm:$0xff]
  %v396 = vld [vmem:[%s2 + $0x10] sm:$0xff]
  %v397 = vld [vmem:[%s2 + $0x18] sm:$0xff]
  %v398 = vld [vmem:[%s2 + $0x20] sm:$0xff]
  %v399 = vld [vmem:[%s2 + $0x28] sm:$0xff]
  %v400 = vld [vmem:[%s2 + $0x30] sm:$0xff]
  %v401 = vld [vmem:[%s2 + $0x38] sm:$0xff]
  %v402 = vld [vmem:[%s2 + $0x40] sm:$0xff]
  %v403 = vld [vmem:[%s2 + $0x48] sm:$0xff]
  %v404 = vld [vmem:[%s2 + $0x50] sm:$0xff]
  %v405 = vld [vmem:[%s2 + $0x58] sm:$0xff]
  %v406 = vld [vmem:[%s2 + $0x60] sm:$0xff]
  %v407 = vld [vmem:[%s2 + $0x68] sm:$0xff]
  %v408 = vld [vmem:[%s2 + $0x70] sm:$0xff]
  %v409 = vld [vmem:[%s2 + $0x78] sm:$0xff]
  %v410 = vld [vmem:[%s3] sm:$0x1]
  %v412 = vlaneseq
  %v413 = vshrl.u32 %v412, 7
  %v414 = vsub.s32 0, %v413
  %v415 = vrot.slane %v410, %v414
  %417 = vmatprep.subr.mxu0 0.0
  %418 = vmatpush1.msra.mxu0 %v394
  %419 = vmatprep.subr.mxu0 0.0
  %420 = vmatpush1.msra.mxu0 %v395
  %421 = vmatprep.subr.mxu0 0.0
  %422 = vmatpush1.msra.mxu0 %v396
  %423 = vmatprep.subr.mxu0 0.0
  %424 = vmatpush1.msra.mxu0 %v397
  %425 = vmatprep.subr.mxu0 0.0
  %426 = vmatpush1.msra.mxu0 %v398
  %427 = vmatprep.subr.mxu0 0.0
  %428 = vmatpush1.msra.mxu0 %v399
  %429 = vmatprep.subr.mxu0 0.0
  %430 = vmatpush1.msra.mxu0 %v400
  %431 = vmatprep.subr.mxu0 0.0
  %432 = vmatpush1.msra.mxu0 %v401
  %433 = vmatprep.subr.mxu0 0.0
  %434 = vmatpush1.msra.mxu0 %v402
  %435 = vmatprep.subr.mxu0 0.0
  %436 = vmatpush1.msra.mxu0 %v403
  %437 = vmatprep.subr.mxu0 0.0
  %438 = vmatpush1.msra.mxu0 %v404
  %439 = vmatprep.subr.mxu0 0.0
  %440 = vmatpush1.msra.mxu0 %v405
  %441 = vmatprep.subr.mxu0 0.0
  %442 = vmatpush1.msra.mxu0 %v406
  %443 = vmatprep.subr.mxu0 0.0
  %444 = vmatpush1.msra.mxu0 %v407
  %445 = vmatprep.subr.mxu0 0.0
  %446 = vmatpush1.msra.mxu0 %v408
  %447 = vmatprep.subr.mxu0 0.0
  %448 = vmatpush1.msra.mxu0 %v409
  %449 = vmatprep.subr.mxu0 0.0
  %450 = vmatpush1.msra.mxu0 0.0
  %451 = vmatprep.subr.mxu0 0.0
  %452 = vmatpush1.msra.mxu0 0.0
  %453 = vmatprep.subr.mxu0 0.0
  %454 = vmatpush1.msra.mxu0 0.0
  %455 = vmatprep.subr.mxu0 0.0
  %456 = vmatpush1.msra.mxu0 0.0
  %457 = vmatprep.subr.mxu0 0.0
  %458 = vmatpush1.msra.mxu0 0.0
  %459 = vmatprep.subr.mxu0 0.0
  %460 = vmatpush1.msra.mxu0 0.0
  %461 = vmatprep.subr.mxu0 0.0
  %462 = vmatpush1.msra.mxu0 0.0
  %463 = vmatprep.subr.mxu0 0.0
  %464 = vmatpush1.msra.mxu0 0.0
  %465 = vmatprep.subr.mxu0 0.0
  %466 = vmatpush1.msra.mxu0 0.0
  %467 = vmatprep.subr.mxu0 0.0
  %468 = vmatpush1.msra.mxu0 0.0
  %469 = vmatprep.subr.mxu0 0.0
  %470 = vmatpush1.msra.mxu0 0.0
  %471 = vmatprep.subr.mxu0 0.0
  %472 = vmatpush1.msra.mxu0 0.0
  %473 = vmatprep.subr.mxu0 0.0
  %474 = vmatpush1.msra.mxu0 0.0
  %475 = vmatprep.subr.mxu0 0.0
  %476 = vmatpush1.msra.mxu0 0.0
  %477 = vmatprep.subr.mxu0 0.0
  %478 = vmatpush1.msra.mxu0 0.0
  %479 = vmatprep.subr.mxu0 0.0
  %480 = vmatpush1.msra.mxu0 0.0
  %481 = vmatprep.mubr.f32.mxu0 0.0
  %482 = vmatmul.mubr.f32.gmra.mrb[0].mxu0 %v393
  %v483 = vpop.f32.mrb[0].mxu0
  %v484 = vadd.f32 %v415, %v483
  %v485 = vpop.f32.mrb[0].mxu0
  %486 = vdwg.mxu0
  %vm487 = vcmp.gt.f32.partialorder %v484, 0.0
  %v488 = vsel %vm487, 1, 0
  %v489 = vcvt.s32.f32 %v488
  %s490 = scalar_lea.vmem %s4, 16
  %491 = vst [vmem:[%s490] sm:$0xff] %v489
  %s492 = scalar_lea.vmem %s0, 24
  %v493 = vld [vmem:[%s492] sm:$0xff]
  %v494 = vld [vmem:[%s1] sm:$0xff]
  %v495 = vld [vmem:[%s1 + $0x8] sm:$0xff]
  %v496 = vld [vmem:[%s1 + $0x10] sm:$0xff]
  %v497 = vld [vmem:[%s1 + $0x18] sm:$0xff]
  %v498 = vld [vmem:[%s1 + $0x20] sm:$0xff]
  %v499 = vld [vmem:[%s1 + $0x28] sm:$0xff]
  %v500 = vld [vmem:[%s1 + $0x30] sm:$0xff]
  %v501 = vld [vmem:[%s1 + $0x38] sm:$0xff]
  %v502 = vld [vmem:[%s1 + $0x40] sm:$0xff]
  %v503 = vld [vmem:[%s1 + $0x48] sm:$0xff]
  %v504 = vld [vmem:[%s1 + $0x50] sm:$0xff]
  %v505 = vld [vmem:[%s1 + $0x58] sm:$0xff]
  %v506 = vld [vmem:[%s1 + $0x60] sm:$0xff]
  %v507 = vld [vmem:[%s1 + $0x68] sm:$0xff]
  %v508 = vld [vmem:[%s1 + $0x70] sm:$0xff]
  %v509 = vld [vmem:[%s1 + $0x78] sm:$0xff]
  %510 = vmatprep.subr.mxu0 0.0
  %511 = vmatpush1.msra.mxu0 %v494
  %512 = vmatprep.subr.mxu0 0.0
  %513 = vmatpush1.msra.mxu0 %v495
  %514 = vmatprep.subr.mxu0 0.0
  %515 = vmatpush1.msra.mxu0 %v496
  %516 = vmatprep.subr.mxu0 0.0
  %517 = vmatpush1.msra.mxu0 %v497
  %518 = vmatprep.subr.mxu0 0.0
  %519 = vmatpush1.msra.mxu0 %v498
  %520 = vmatprep.subr.mxu0 0.0
  %521 = vmatpush1.msra.mxu0 %v499
  %522 = vmatprep.subr.mxu0 0.0
  %523 = vmatpush1.msra.mxu0 %v500
  %524 = vmatprep.subr.mxu0 0.0
  %525 = vmatpush1.msra.mxu0 %v501
  %526 = vmatprep.subr.mxu0 0.0
  %527 = vmatpush1.msra.mxu0 %v502
  %528 = vmatprep.subr.mxu0 0.0
  %529 = vmatpush1.msra.mxu0 %v503
  %530 = vmatprep.subr.mxu0 0.0
  %531 = vmatpush1.msra.mxu0 %v504
  %532 = vmatprep.subr.mxu0 0.0
  %533 = vmatpush1.msra.mxu0 %v505
  %534 = vmatprep.subr.mxu0 0.0
  %535 = vmatpush1.msra.mxu0 %v506
  %536 = vmatprep.subr.mxu0 0.0
  %537 = vmatpush1.msra.mxu0 %v507
  %538 = vmatprep.subr.mxu0 0.0
  %539 = vmatpush1.msra.mxu0 %v508
  %540 = vmatprep.subr.mxu0 0.0
  %541 = vmatpush1.msra.mxu0 %v509
  %542 = vmatprep.subr.mxu0 0.0
  %543 = vmatpush1.msra.mxu0 0.0
  %544 = vmatprep.subr.mxu0 0.0
  %545 = vmatpush1.msra.mxu0 0.0
  %546 = vmatprep.subr.mxu0 0.0
  %547 = vmatpush1.msra.mxu0 0.0
  %548 = vmatprep.subr.mxu0 0.0
  %549 = vmatpush1.msra.mxu0 0.0
  %550 = vmatprep.subr.mxu0 0.0
  %551 = vmatpush1.msra.mxu0 0.0
  %552 = vmatprep.subr.mxu0 0.0
  %553 = vmatpush1.msra.mxu0 0.0
  %554 = vmatprep.subr.mxu0 0.0
  %555 = vmatpush1.msra.mxu0 0.0
  %556 = vmatprep.subr.mxu0 0.0
  %557 = vmatpush1.msra.mxu0 0.0
  %558 = vmatprep.subr.mxu0 0.0
  %559 = vmatpush1.msra.mxu0 0.0
  %560 = vmatprep.subr.mxu0 0.0
  %561 = vmatpush1.msra.mxu0 0.0
  %562 = vmatprep.subr.mxu0 0.0
  %563 = vmatpush1.msra.mxu0 0.0
  %564 = vmatprep.subr.mxu0 0.0
  %565 = vmatpush1.msra.mxu0 0.0
  %566 = vmatprep.subr.mxu0 0.0
  %567 = vmatpush1.msra.mxu0 0.0
  %568 = vmatprep.subr.mxu0 0.0
  %569 = vmatpush1.msra.mxu0 0.0
  %570 = vmatprep.subr.mxu0 0.0
  %571 = vmatpush1.msra.mxu0 0.0
  %572 = vmatprep.subr.mxu0 0.0
  %573 = vmatpush1.msra.mxu0 0.0
  %574 = vmatprep.mubr.f32.mxu0 0.0
  %575 = vmatmul.mubr.f32.gmra.mrb[0].mxu0 %v489
  %v576 = vpop.f32.mrb[0].mxu0
  %v577 = vadd.f32 0.0, %v576
  %v578 = vpop.f32.mrb[0].mxu0
  %579 = vdwg.mxu0
  %v580 = vadd.f32 %v493, %v577
  %v581 = vtanh.pop %v580
  %v582 = vld [vmem:[%s2] sm:$0xff]
  %v583 = vld [vmem:[%s2 + $0x8] sm:$0xff]
  %v584 = vld [vmem:[%s2 + $0x10] sm:$0xff]
  %v585 = vld [vmem:[%s2 + $0x18] sm:$0xff]
  %v586 = vld [vmem:[%s2 + $0x20] sm:$0xff]
  %v587 = vld [vmem:[%s2 + $0x28] sm:$0xff]
  %v588 = vld [vmem:[%s2 + $0x30] sm:$0xff]
  %v589 = vld [vmem:[%s2 + $0x38] sm:$0xff]
  %v590 = vld [vmem:[%s2 + $0x40] sm:$0xff]
  %v591 = vld [vmem:[%s2 + $0x48] sm:$0xff]
  %v592 = vld [vmem:[%s2 + $0x50] sm:$0xff]
  %v593 = vld [vmem:[%s2 + $0x58] sm:$0xff]
  %v594 = vld [vmem:[%s2 + $0x60] sm:$0xff]
  %v595 = vld [vmem:[%s2 + $0x68] sm:$0xff]
  %v596 = vld [vmem:[%s2 + $0x70] sm:$0xff]
  %v597 = vld [vmem:[%s2 + $0x78] sm:$0xff]
  %v598 = vld [vmem:[%s3] sm:$0x1]
  %v600 = vlaneseq
  %v601 = vshrl.u32 %v600, 7
  %v602 = vsub.s32 0, %v601
  %v603 = vrot.slane %v598, %v602
  %605 = vmatprep.subr.mxu0 0.0
  %606 = vmatpush1.msra.mxu0 %v582
  %607 = vmatprep.subr.mxu0 0.0
  %608 = vmatpush1.msra.mxu0 %v583
  %609 = vmatprep.subr.mxu0 0.0
  %610 = vmatpush1.msra.mxu0 %v584
  %611 = vmatprep.subr.mxu0 0.0
  %612 = vmatpush1.msra.mxu0 %v585
  %613 = vmatprep.subr.mxu0 0.0
  %614 = vmatpush1.msra.mxu0 %v586
  %615 = vmatprep.subr.mxu0 0.0
  %616 = vmatpush1.msra.mxu0 %v587
  %617 = vmatprep.subr.mxu0 0.0
  %618 = vmatpush1.msra.mxu0 %v588
  %619 = vmatprep.subr.mxu0 0.0
  %620 = vmatpush1.msra.mxu0 %v589
  %621 = vmatprep.subr.mxu0 0.0
  %622 = vmatpush1.msra.mxu0 %v590
  %623 = vmatprep.subr.mxu0 0.0
  %624 = vmatpush1.msra.mxu0 %v591
  %625 = vmatprep.subr.mxu0 0.0
  %626 = vmatpush1.msra.mxu0 %v592
  %627 = vmatprep.subr.mxu0 0.0
  %628 = vmatpush1.msra.mxu0 %v593
  %629 = vmatprep.subr.mxu0 0.0
  %630 = vmatpush1.msra.mxu0 %v594
  %631 = vmatprep.subr.mxu0 0.0
  %632 = vmatpush1.msra.mxu0 %v595
  %633 = vmatprep.subr.mxu0 0.0
  %634 = vmatpush1.msra.mxu0 %v596
  %635 = vmatprep.subr.mxu0 0.0
  %636 = vmatpush1.msra.mxu0 %v597
  %637 = vmatprep.subr.mxu0 0.0
  %638 = vmatpush1.msra.mxu0 0.0
  %639 = vmatprep.subr.mxu0 0.0
  %640 = vmatpush1.msra.mxu0 0.0
  %641 = vmatprep.subr.mxu0 0.0
  %642 = vmatpush1.msra.mxu0 0.0
  %643 = vmatprep.subr.mxu0 0.0
  %644 = vmatpush1.msra.mxu0 0.0
  %645 = vmatprep.subr.mxu0 0.0
  %646 = vmatpush1.msra.mxu0 0.0
  %647 = vmatprep.subr.mxu0 0.0
  %648 = vmatpush1.msra.mxu0 0.0
  %649 = vmatprep.subr.mxu0 0.0
  %650 = vmatpush1.msra.mxu0 0.0
  %651 = vmatprep.subr.mxu0 0.0
  %652 = vmatpush1.msra.mxu0 0.0
  %653 = vmatprep.subr.mxu0 0.0
  %654 = vmatpush1.msra.mxu0 0.0
  %655 = vmatprep.subr.mxu0 0.0
  %656 = vmatpush1.msra.mxu0 0.0
  %657 = vmatprep.subr.mxu0 0.0
  %658 = vmatpush1.msra.mxu0 0.0
  %659 = vmatprep.subr.mxu0 0.0
  %660 = vmatpush1.msra.mxu0 0.0
  %661 = vmatprep.subr.mxu0 0.0
  %662 = vmatpush1.msra.mxu0 0.0
  %663 = vmatprep.subr.mxu0 0.0
  %664 = vmatpush1.msra.mxu0 0.0
  %665 = vmatprep.subr.mxu0 0.0
  %666 = vmatpush1.msra.mxu0 0.0
  %667 = vmatprep.subr.mxu0 0.0
  %668 = vmatpush1.msra.mxu0 0.0
  %669 = vmatprep.mubr.f32.mxu0 0.0
  %670 = vmatmul.mubr.f32.gmra.mrb[0].mxu0 %v581
  %v671 = vpop.f32.mrb[0].mxu0
  %v672 = vadd.f32 %v603, %v671
  %v673 = vpop.f32.mrb[0].mxu0
  %674 = vdwg.mxu0
  %vm675 = vcmp.gt.f32.partialorder %v672, 0.0
  %v676 = vsel %vm675, 1, 0
  %v677 = vcvt.s32.f32 %v676
  %s678 = scalar_lea.vmem %s4, 24
  %679 = vst [vmem:[%s678] sm:$0xff] %v677
  %s680 = scalar_lea.vmem %s0, 32
  %v681 = vld [vmem:[%s680] sm:$0xff]
  %v682 = vld [vmem:[%s1] sm:$0xff]
  %v683 = vld [vmem:[%s1 + $0x8] sm:$0xff]
  %v684 = vld [vmem:[%s1 + $0x10] sm:$0xff]
  %v685 = vld [vmem:[%s1 + $0x18] sm:$0xff]
  %v686 = vld [vmem:[%s1 + $0x20] sm:$0xff]
  %v687 = vld [vmem:[%s1 + $0x28] sm:$0xff]
  %v688 = vld [vmem:[%s1 + $0x30] sm:$0xff]
  %v689 = vld [vmem:[%s1 + $0x38] sm:$0xff]
  %v690 = vld [vmem:[%s1 + $0x40] sm:$0xff]
  %v691 = vld [vmem:[%s1 + $0x48] sm:$0xff]
  %v692 = vld [vmem:[%s1 + $0x50] sm:$0xff]
  %v693 = vld [vmem:[%s1 + $0x58] sm:$0xff]
  %v694 = vld [vmem:[%s1 + $0x60] sm:$0xff]
  %v695 = vld [vmem:[%s1 + $0x68] sm:$0xff]
  %v696 = vld [vmem:[%s1 + $0x70] sm:$0xff]
  %v697 = vld [vmem:[%s1 + $0x78] sm:$0xff]
  %698 = vmatprep.subr.mxu0 0.0
  %699 = vmatpush1.msra.mxu0 %v682
  %700 = vmatprep.subr.mxu0 0.0
  %701 = vmatpush1.msra.mxu0 %v683
  %702 = vmatprep.subr.mxu0 0.0
  %703 = vmatpush1.msra.mxu0 %v684
  %704 = vmatprep.subr.mxu0 0.0
  %705 = vmatpush1.msra.mxu0 %v685
  %706 = vmatprep.subr.mxu0 0.0
  %707 = vmatpush1.msra.mxu0 %v686
  %708 = vmatprep.subr.mxu0 0.0
  %709 = vmatpush1.msra.mxu0 %v687
  %710 = vmatprep.subr.mxu0 0.0
  %711 = vmatpush1.msra.mxu0 %v688
  %712 = vmatprep.subr.mxu0 0.0
  %713 = vmatpush1.msra.mxu0 %v689
  %714 = vmatprep.subr.mxu0 0.0
  %715 = vmatpush1.msra.mxu0 %v690
  %716 = vmatprep.subr.mxu0 0.0
  %717 = vmatpush1.msra.mxu0 %v691
  %718 = vmatprep.subr.mxu0 0.0
  %719 = vmatpush1.msra.mxu0 %v692
  %720 = vmatprep.subr.mxu0 0.0
  %721 = vmatpush1.msra.mxu0 %v693
  %722 = vmatprep.subr.mxu0 0.0
  %723 = vmatpush1.msra.mxu0 %v694
  %724 = vmatprep.subr.mxu0 0.0
  %725 = vmatpush1.msra.mxu0 %v695
  %726 = vmatprep.subr.mxu0 0.0
  %727 = vmatpush1.msra.mxu0 %v696
  %728 = vmatprep.subr.mxu0 0.0
  %729 = vmatpush1.msra.mxu0 %v697
  %730 = vmatprep.subr.mxu0 0.0
  %731 = vmatpush1.msra.mxu0 0.0
  %732 = vmatprep.subr.mxu0 0.0
  %733 = vmatpush1.msra.mxu0 0.0
  %734 = vmatprep.subr.mxu0 0.0
  %735 = vmatpush1.msra.mxu0 0.0
  %736 = vmatprep.subr.mxu0 0.0
  %737 = vmatpush1.msra.mxu0 0.0
  %738 = vmatprep.subr.mxu0 0.0
  %739 = vmatpush1.msra.mxu0 0.0
  %740 = vmatprep.subr.mxu0 0.0
  %741 = vmatpush1.msra.mxu0 0.0
  %742 = vmatprep.subr.mxu0 0.0
  %743 = vmatpush1.msra.mxu0 0.0
  %744 = vmatprep.subr.mxu0 0.0
  %745 = vmatpush1.msra.mxu0 0.0
  %746 = vmatprep.subr.mxu0 0.0
  %747 = vmatpush1.msra.mxu0 0.0
  %748 = vmatprep.subr.mxu0 0.0
  %749 = vmatpush1.msra.mxu0 0.0
  %750 = vmatprep.subr.mxu0 0.0
  %751 = vmatpush1.msra.mxu0 0.0
  %752 = vmatprep.subr.mxu0 0.0
  %753 = vmatpush1.msra.mxu0 0.0
  %754 = vmatprep.subr.mxu0 0.0
  %755 = vmatpush1.msra.mxu0 0.0
  %756 = vmatprep.subr.mxu0 0.0
  %757 = vmatpush1.msra.mxu0 0.0
  %758 = vmatprep.subr.mxu0 0.0
  %759 = vmatpush1.msra.mxu0 0.0
  %760 = vmatprep.subr.mxu0 0.0
  %761 = vmatpush1.msra.mxu0 0.0
  %762 = vmatprep.mubr.f32.mxu0 0.0
  %763 = vmatmul.mubr.f32.gmra.mrb[0].mxu0 %v677
  %v764 = vpop.f32.mrb[0].mxu0
  %v765 = vadd.f32 0.0, %v764
  %v766 = vpop.f32.mrb[0].mxu0
  %767 = vdwg.mxu0
  %v768 = vadd.f32 %v681, %v765
  %v769 = vtanh.pop %v768
  %v770 = vld [vmem:[%s2] sm:$0xff]
  %v771 = vld [vmem:[%s2 + $0x8] sm:$0xff]
  %v772 = vld [vmem:[%s2 + $0x10] sm:$0xff]
  %v773 = vld [vmem:[%s2 + $0x18] sm:$0xff]
  %v774 = vld [vmem:[%s2 + $0x20] sm:$0xff]
  %v775 = vld [vmem:[%s2 + $0x28] sm:$0xff]
  %v776 = vld [vmem:[%s2 + $0x30] sm:$0xff]
  %v777 = vld [vmem:[%s2 + $0x38] sm:$0xff]
  %v778 = vld [vmem:[%s2 + $0x40] sm:$0xff]
  %v779 = vld [vmem:[%s2 + $0x48] sm:$0xff]
  %v780 = vld [vmem:[%s2 + $0x50] sm:$0xff]
  %v781 = vld [vmem:[%s2 + $0x58] sm:$0xff]
  %v782 = vld [vmem:[%s2 + $0x60] sm:$0xff]
  %v783 = vld [vmem:[%s2 + $0x68] sm:$0xff]
  %v784 = vld [vmem:[%s2 + $0x70] sm:$0xff]
  %v785 = vld [vmem:[%s2 + $0x78] sm:$0xff]
  %v786 = vld [vmem:[%s3] sm:$0x1]
  %v788 = vlaneseq
  %v789 = vshrl.u32 %v788, 7
  %v790 = vsub.s32 0, %v789
  %v791 = vrot.slane %v786, %v790
  %793 = vmatprep.subr.mxu0 0.0
  %794 = vmatpush1.msra.mxu0 %v770
  %795 = vmatprep.subr.mxu0 0.0
  %796 = vmatpush1.msra.mxu0 %v771
  %797 = vmatprep.subr.mxu0 0.0
  %798 = vmatpush1.msra.mxu0 %v772
  %799 = vmatprep.subr.mxu0 0.0
  %800 = vmatpush1.msra.mxu0 %v773
  %801 = vmatprep.subr.mxu0 0.0
  %802 = vmatpush1.msra.mxu0 %v774
  %803 = vmatprep.subr.mxu0 0.0
  %804 = vmatpush1.msra.mxu0 %v775
  %805 = vmatprep.subr.mxu0 0.0
  %806 = vmatpush1.msra.mxu0 %v776
  %807 = vmatprep.subr.mxu0 0.0
  %808 = vmatpush1.msra.mxu0 %v777
  %809 = vmatprep.subr.mxu0 0.0
  %810 = vmatpush1.msra.mxu0 %v778
  %811 = vmatprep.subr.mxu0 0.0
  %812 = vmatpush1.msra.mxu0 %v779
  %813 = vmatprep.subr.mxu0 0.0
  %814 = vmatpush1.msra.mxu0 %v780
  %815 = vmatprep.subr.mxu0 0.0
  %816 = vmatpush1.msra.mxu0 %v781
  %817 = vmatprep.subr.mxu0 0.0
  %818 = vmatpush1.msra.mxu0 %v782
  %819 = vmatprep.subr.mxu0 0.0
  %820 = vmatpush1.msra.mxu0 %v783
  %821 = vmatprep.subr.mxu0 0.0
  %822 = vmatpush1.msra.mxu0 %v784
  %823 = vmatprep.subr.mxu0 0.0
  %824 = vmatpush1.msra.mxu0 %v785
  %825 = vmatprep.subr.mxu0 0.0
  %826 = vmatpush1.msra.mxu0 0.0
  %827 = vmatprep.subr.mxu0 0.0
  %828 = vmatpush1.msra.mxu0 0.0
  %829 = vmatprep.subr.mxu0 0.0
  %830 = vmatpush1.msra.mxu0 0.0
  %831 = vmatprep.subr.mxu0 0.0
  %832 = vmatpush1.msra.mxu0 0.0
  %833 = vmatprep.subr.mxu0 0.0
  %834 = vmatpush1.msra.mxu0 0.0
  %835 = vmatprep.subr.mxu0 0.0
  %836 = vmatpush1.msra.mxu0 0.0
  %837 = vmatprep.subr.mxu0 0.0
  %838 = vmatpush1.msra.mxu0 0.0
  %839 = vmatprep.subr.mxu0 0.0
  %840 = vmatpush1.msra.mxu0 0.0
  %841 = vmatprep.subr.mxu0 0.0
  %842 = vmatpush1.msra.mxu0 0.0
  %843 = vmatprep.subr.mxu0 0.0
  %844 = vmatpush1.msra.mxu0 0.0
  %845 = vmatprep.subr.mxu0 0.0
  %846 = vmatpush1.msra.mxu0 0.0
  %847 = vmatprep.subr.mxu0 0.0
  %848 = vmatpush1.msra.mxu0 0.0
  %849 = vmatprep.subr.mxu0 0.0
  %850 = vmatpush1.msra.mxu0 0.0
  %851 = vmatprep.subr.mxu0 0.0
  %852 = vmatpush1.msra.mxu0 0.0
  %853 = vmatprep.subr.mxu0 0.0
  %854 = vmatpush1.msra.mxu0 0.0
  %855 = vmatprep.subr.mxu0 0.0
  %856 = vmatpush1.msra.mxu0 0.0
  %857 = vmatprep.mubr.f32.mxu0 0.0
  %858 = vmatmul.mubr.f32.gmra.mrb[0].mxu0 %v769
  %v859 = vpop.f32.mrb[0].mxu0
  %v860 = vadd.f32 %v791, %v859
  %v861 = vpop.f32.mrb[0].mxu0
  %862 = vdwg.mxu0
  %vm863 = vcmp.gt.f32.partialorder %v860, 0.0
  %v864 = vsel %vm863, 1, 0
  %v865 = vcvt.s32.f32 %v864
  %s866 = scalar_lea.vmem %s4, 32
  %867 = vst [vmem:[%s866] sm:$0xff] %v865
  %s868 = scalar_lea.vmem %s0, 40
  %v869 = vld [vmem:[%s868] sm:$0xff]
  %v870 = vld [vmem:[%s1] sm:$0xff]
  %v871 = vld [vmem:[%s1 + $0x8] sm:$0xff]
  %v872 = vld [vmem:[%s1 + $0x10] sm:$0xff]
  %v873 = vld [vmem:[%s1 + $0x18] sm:$0xff]
  %v874 = vld [vmem:[%s1 + $0x20] sm:$0xff]
  %v875 = vld [vmem:[%s1 + $0x28] sm:$0xff]
  %v876 = vld [vmem:[%s1 + $0x30] sm:$0xff]
  %v877 = vld [vmem:[%s1 + $0x38] sm:$0xff]
  %v878 = vld [vmem:[%s1 + $0x40] sm:$0xff]
  %v879 = vld [vmem:[%s1 + $0x48] sm:$0xff]
  %v880 = vld [vmem:[%s1 + $0x50] sm:$0xff]
  %v881 = vld [vmem:[%s1 + $0x58] sm:$0xff]
  %v882 = vld [vmem:[%s1 + $0x60] sm:$0xff]
  %v883 = vld [vmem:[%s1 + $0x68] sm:$0xff]
  %v884 = vld [vmem:[%s1 + $0x70] sm:$0xff]
  %v885 = vld [vmem:[%s1 + $0x78] sm:$0xff]
  %886 = vmatprep.subr.mxu0 0.0
  %887 = vmatpush1.msra.mxu0 %v870
  %888 = vmatprep.subr.mxu0 0.0
  %889 = vmatpush1.msra.mxu0 %v871
  %890 = vmatprep.subr.mxu0 0.0
  %891 = vmatpush1.msra.mxu0 %v872
  %892 = vmatprep.subr.mxu0 0.0
  %893 = vmatpush1.msra.mxu0 %v873
  %894 = vmatprep.subr.mxu0 0.0
  %895 = vmatpush1.msra.mxu0 %v874
  %896 = vmatprep.subr.mxu0 0.0
  %897 = vmatpush1.msra.mxu0 %v875
  %898 = vmatprep.subr.mxu0 0.0
  %899 = vmatpush1.msra.mxu0 %v876
  %900 = vmatprep.subr.mxu0 0.0
  %901 = vmatpush1.msra.mxu0 %v877
  %902 = vmatprep.subr.mxu0 0.0
  %903 = vmatpush1.msra.mxu0 %v878
  %904 = vmatprep.subr.mxu0 0.0
  %905 = vmatpush1.msra.mxu0 %v879
  %906 = vmatprep.subr.mxu0 0.0
  %907 = vmatpush1.msra.mxu0 %v880
  %908 = vmatprep.subr.mxu0 0.0
  %909 = vmatpush1.msra.mxu0 %v881
  %910 = vmatprep.subr.mxu0 0.0
  %911 = vmatpush1.msra.mxu0 %v882
  %912 = vmatprep.subr.mxu0 0.0
  %913 = vmatpush1.msra.mxu0 %v883
  %914 = vmatprep.subr.mxu0 0.0
  %915 = vmatpush1.msra.mxu0 %v884
  %916 = vmatprep.subr.mxu0 0.0
  %917 = vmatpush1.msra.mxu0 %v885
  %918 = vmatprep.subr.mxu0 0.0
  %919 = vmatpush1.msra.mxu0 0.0
  %920 = vmatprep.subr.mxu0 0.0
  %921 = vmatpush1.msra.mxu0 0.0
  %922 = vmatprep.subr.mxu0 0.0
  %923 = vmatpush1.msra.mxu0 0.0
  %924 = vmatprep.subr.mxu0 0.0
  %925 = vmatpush1.msra.mxu0 0.0
  %926 = vmatprep.subr.mxu0 0.0
  %927 = vmatpush1.msra.mxu0 0.0
  %928 = vmatprep.subr.mxu0 0.0
  %929 = vmatpush1.msra.mxu0 0.0
  %930 = vmatprep.subr.mxu0 0.0
  %931 = vmatpush1.msra.mxu0 0.0
  %932 = vmatprep.subr.mxu0 0.0
  %933 = vmatpush1.msra.mxu0 0.0
  %934 = vmatprep.subr.mxu0 0.0
  %935 = vmatpush1.msra.mxu0 0.0
  %936 = vmatprep.subr.mxu0 0.0
  %937 = vmatpush1.msra.mxu0 0.0
  %938 = vmatprep.subr.mxu0 0.0
  %939 = vmatpush1.msra.mxu0 0.0
  %940 = vmatprep.subr.mxu0 0.0
  %941 = vmatpush1.msra.mxu0 0.0
  %942 = vmatprep.subr.mxu0 0.0
  %943 = vmatpush1.msra.mxu0 0.0
  %944 = vmatprep.subr.mxu0 0.0
  %945 = vmatpush1.msra.mxu0 0.0
  %946 = vmatprep.subr.mxu0 0.0
  %947 = vmatpush1.msra.mxu0 0.0
  %948 = vmatprep.subr.mxu0 0.0
  %949 = vmatpush1.msra.mxu0 0.0
  %950 = vmatprep.mubr.f32.mxu0 0.0
  %951 = vmatmul.mubr.f32.gmra.mrb[0].mxu0 %v865
  %v952 = vpop.f32.mrb[0].mxu0
  %v953 = vadd.f32 0.0, %v952
  %v954 = vpop.f32.mrb[0].mxu0
  %955 = vdwg.mxu0
  %v956 = vadd.f32 %v869, %v953
  %v957 = vtanh.pop %v956
  %v958 = vld [vmem:[%s2] sm:$0xff]
  %v959 = vld [vmem:[%s2 + $0x8] sm:$0xff]
  %v960 = vld [vmem:[%s2 + $0x10] sm:$0xff]
  %v961 = vld [vmem:[%s2 + $0x18] sm:$0xff]
  %v962 = vld [vmem:[%s2 + $0x20] sm:$0xff]
  %v963 = vld [vmem:[%s2 + $0x28] sm:$0xff]
  %v964 = vld [vmem:[%s2 + $0x30] sm:$0xff]
  %v965 = vld [vmem:[%s2 + $0x38] sm:$0xff]
  %v966 = vld [vmem:[%s2 + $0x40] sm:$0xff]
  %v967 = vld [vmem:[%s2 + $0x48] sm:$0xff]
  %v968 = vld [vmem:[%s2 + $0x50] sm:$0xff]
  %v969 = vld [vmem:[%s2 + $0x58] sm:$0xff]
  %v970 = vld [vmem:[%s2 + $0x60] sm:$0xff]
  %v971 = vld [vmem:[%s2 + $0x68] sm:$0xff]
  %v972 = vld [vmem:[%s2 + $0x70] sm:$0xff]
  %v973 = vld [vmem:[%s2 + $0x78] sm:$0xff]
  %v974 = vld [vmem:[%s3] sm:$0x1]
  %v976 = vlaneseq
  %v977 = vshrl.u32 %v976, 7
  %v978 = vsub.s32 0, %v977
  %v979 = vrot.slane %v974, %v978
  %981 = vmatprep.subr.mxu0 0.0
  %982 = vmatpush1.msra.mxu0 %v958
  %983 = vmatprep.subr.mxu0 0.0
  %984 = vmatpush1.msra.mxu0 %v959
  %985 = vmatprep.subr.mxu0 0.0
  %986 = vmatpush1.msra.mxu0 %v960
  %987 = vmatprep.subr.mxu0 0.0
  %988 = vmatpush1.msra.mxu0 %v961
  %989 = vmatprep.subr.mxu0 0.0
  %990 = vmatpush1.msra.mxu0 %v962
  %991 = vmatprep.subr.mxu0 0.0
  %992 = vmatpush1.msra.mxu0 %v963
  %993 = vmatprep.subr.mxu0 0.0
  %994 = vmatpush1.msra.mxu0 %v964
  %995 = vmatprep.subr.mxu0 0.0
  %996 = vmatpush1.msra.mxu0 %v965
  %997 = vmatprep.subr.mxu0 0.0
  %998 = vmatpush1.msra.mxu0 %v966
  %999 = vmatprep.subr.mxu0 0.0
  %1000 = vmatpush1.msra.mxu0 %v967
  %1001 = vmatprep.subr.mxu0 0.0
  %1002 = vmatpush1.msra.mxu0 %v968
  %1003 = vmatprep.subr.mxu0 0.0
  %1004 = vmatpush1.msra.mxu0 %v969
  %1005 = vmatprep.subr.mxu0 0.0
  %1006 = vmatpush1.msra.mxu0 %v970
  %1007 = vmatprep.subr.mxu0 0.0
  %1008 = vmatpush1.msra.mxu0 %v971
  %1009 = vmatprep.subr.mxu0 0.0
  %1010 = vmatpush1.msra.mxu0 %v972
  %1011 = vmatprep.subr.mxu0 0.0
  %1012 = vmatpush1.msra.mxu0 %v973
  %1013 = vmatprep.subr.mxu0 0.0
  %1014 = vmatpush1.msra.mxu0 0.0
  %1015 = vmatprep.subr.mxu0 0.0
  %1016 = vmatpush1.msra.mxu0 0.0
  %1017 = vmatprep.subr.mxu0 0.0
  %1018 = vmatpush1.msra.mxu0 0.0
  %1019 = vmatprep.subr.mxu0 0.0
  %1020 = vmatpush1.msra.mxu0 0.0
  %1021 = vmatprep.subr.mxu0 0.0
  %1022 = vmatpush1.msra.mxu0 0.0
  %1023 = vmatprep.subr.mxu0 0.0
  %1024 = vmatpush1.msra.mxu0 0.0
  %1025 = vmatprep.subr.mxu0 0.0
  %1026 = vmatpush1.msra.mxu0 0.0
  %1027 = vmatprep.subr.mxu0 0.0
  %1028 = vmatpush1.msra.mxu0 0.0
  %1029 = vmatprep.subr.mxu0 0.0
  %1030 = vmatpush1.msra.mxu0 0.0
  %1031 = vmatprep.subr.mxu0 0.0
  %1032 = vmatpush1.msra.mxu0 0.0
  %1033 = vmatprep.subr.mxu0 0.0
  %1034 = vmatpush1.msra.mxu0 0.0
  %1035 = vmatprep.subr.mxu0 0.0
  %1036 = vmatpush1.msra.mxu0 0.0
  %1037 = vmatprep.subr.mxu0 0.0
  %1038 = vmatpush1.msra.mxu0 0.0
  %1039 = vmatprep.subr.mxu0 0.0
  %1040 = vmatpush1.msra.mxu0 0.0
  %1041 = vmatprep.subr.mxu0 0.0
  %1042 = vmatpush1.msra.mxu0 0.0
  %1043 = vmatprep.subr.mxu0 0.0
  %1044 = vmatpush1.msra.mxu0 0.0
  %1045 = vmatprep.mubr.f32.mxu0 0.0
  %1046 = vmatmul.mubr.f32.gmra.mrb[0].mxu0 %v957
  %v1047 = vpop.f32.mrb[0].mxu0
  %v1048 = vadd.f32 %v979, %v1047
  %v1049 = vpop.f32.mrb[0].mxu0
  %1050 = vdwg.mxu0
  %vm1051 = vcmp.gt.f32.partialorder %v1048, 0.0
  %v1052 = vsel %vm1051, 1, 0
  %v1053 = vcvt.s32.f32 %v1052
  %s1054 = scalar_lea.vmem %s4, 40
  %1055 = vst [vmem:[%s1054] sm:$0xff] %v1053
  %s1056 = scalar_lea.vmem %s0, 48
  %v1057 = vld [vmem:[%s1056] sm:$0xff]
  %v1058 = vld [vmem:[%s1] sm:$0xff]
  %v1059 = vld [vmem:[%s1 + $0x8] sm:$0xff]
  %v1060 = vld [vmem:[%s1 + $0x10] sm:$0xff]
  %v1061 = vld [vmem:[%s1 + $0x18] sm:$0xff]
  %v1062 = vld [vmem:[%s1 + $0x20] sm:$0xff]
  %v1063 = vld [vmem:[%s1 + $0x28] sm:$0xff]
  %v1064 = vld [vmem:[%s1 + $0x30] sm:$0xff]
  %v1065 = vld [vmem:[%s1 + $0x38] sm:$0xff]
  %v1066 = vld [vmem:[%s1 + $0x40] sm:$0xff]
  %v1067 = vld [vmem:[%s1 + $0x48] sm:$0xff]
  %v1068 = vld [vmem:[%s1 + $0x50] sm:$0xff]
  %v1069 = vld [vmem:[%s1 + $0x58] sm:$0xff]
  %v1070 = vld [vmem:[%s1 + $0x60] sm:$0xff]
  %v1071 = vld [vmem:[%s1 + $0x68] sm:$0xff]
  %v1072 = vld [vmem:[%s1 + $0x70] sm:$0xff]
  %v1073 = vld [vmem:[%s1 + $0x78] sm:$0xff]
  %1074 = vmatprep.subr.mxu0 0.0
  %1075 = vmatpush1.msra.mxu0 %v1058
  %1076 = vmatprep.subr.mxu0 0.0
  %1077 = vmatpush1.msra.mxu0 %v1059
  %1078 = vmatprep.subr.mxu0 0.0
  %1079 = vmatpush1.msra.mxu0 %v1060
  %1080 = vmatprep.subr.mxu0 0.0
  %1081 = vmatpush1.msra.mxu0 %v1061
  %1082 = vmatprep.subr.mxu0 0.0
  %1083 = vmatpush1.msra.mxu0 %v1062
  %1084 = vmatprep.subr.mxu0 0.0
  %1085 = vmatpush1.msra.mxu0 %v1063
  %1086 = vmatprep.subr.mxu0 0.0
  %1087 = vmatpush1.msra.mxu0 %v1064
  %1088 = vmatprep.subr.mxu0 0.0
  %1089 = vmatpush1.msra.mxu0 %v1065
  %1090 = vmatprep.subr.mxu0 0.0
  %1091 = vmatpush1.msra.mxu0 %v1066
  %1092 = vmatprep.subr.mxu0 0.0
  %1093 = vmatpush1.msra.mxu0 %v1067
  %1094 = vmatprep.subr.mxu0 0.0
  %1095 = vmatpush1.msra.mxu0 %v1068
  %1096 = vmatprep.subr.mxu0 0.0
  %1097 = vmatpush1.msra.mxu0 %v1069
  %1098 = vmatprep.subr.mxu0 0.0
  %1099 = vmatpush1.msra.mxu0 %v1070
  %1100 = vmatprep.subr.mxu0 0.0
  %1101 = vmatpush1.msra.mxu0 %v1071
  %1102 = vmatprep.subr.mxu0 0.0
  %1103 = vmatpush1.msra.mxu0 %v1072
  %1104 = vmatprep.subr.mxu0 0.0
  %1105 = vmatpush1.msra.mxu0 %v1073
  %1106 = vmatprep.subr.mxu0 0.0
  %1107 = vmatpush1.msra.mxu0 0.0
  %1108 = vmatprep.subr.mxu0 0.0
  %1109 = vmatpush1.msra.mxu0 0.0
  %1110 = vmatprep.subr.mxu0 0.0
  %1111 = vmatpush1.msra.mxu0 0.0
  %1112 = vmatprep.subr.mxu0 0.0
  %1113 = vmatpush1.msra.mxu0 0.0
  %1114 = vmatprep.subr.mxu0 0.0
  %1115 = vmatpush1.msra.mxu0 0.0
  %1116 = vmatprep.subr.mxu0 0.0
  %1117 = vmatpush1.msra.mxu0 0.0
  %1118 = vmatprep.subr.mxu0 0.0
  %1119 = vmatpush1.msra.mxu0 0.0
  %1120 = vmatprep.subr.mxu0 0.0
  %1121 = vmatpush1.msra.mxu0 0.0
  %1122 = vmatprep.subr.mxu0 0.0
  %1123 = vmatpush1.msra.mxu0 0.0
  %1124 = vmatprep.subr.mxu0 0.0
  %1125 = vmatpush1.msra.mxu0 0.0
  %1126 = vmatprep.subr.mxu0 0.0
  %1127 = vmatpush1.msra.mxu0 0.0
  %1128 = vmatprep.subr.mxu0 0.0
  %1129 = vmatpush1.msra.mxu0 0.0
  %1130 = vmatprep.subr.mxu0 0.0
  %1131 = vmatpush1.msra.mxu0 0.0
  %1132 = vmatprep.subr.mxu0 0.0
  %1133 = vmatpush1.msra.mxu0 0.0
  %1134 = vmatprep.subr.mxu0 0.0
  %1135 = vmatpush1.msra.mxu0 0.0
  %1136 = vmatprep.subr.mxu0 0.0
  %1137 = vmatpush1.msra.mxu0 0.0
  %1138 = vmatprep.mubr.f32.mxu0 0.0
  %1139 = vmatmul.mubr.f32.gmra.mrb[0].mxu0 %v1053
  %v1140 = vpop.f32.mrb[0].mxu0
  %v1141 = vadd.f32 0.0, %v1140
  %v1142 = vpop.f32.mrb[0].mxu0
  %1143 = vdwg.mxu0
  %v1144 = vadd.f32 %v1057, %v1141
  %v1145 = vtanh.pop %v1144
  %v1146 = vld [vmem:[%s2] sm:$0xff]
  %v1147 = vld [vmem:[%s2 + $0x8] sm:$0xff]
  %v1148 = vld [vmem:[%s2 + $0x10] sm:$0xff]
  %v1149 = vld [vmem:[%s2 + $0x18] sm:$0xff]
  %v1150 = vld [vmem:[%s2 + $0x20] sm:$0xff]
  %v1151 = vld [vmem:[%s2 + $0x28] sm:$0xff]
  %v1152 = vld [vmem:[%s2 + $0x30] sm:$0xff]
  %v1153 = vld [vmem:[%s2 + $0x38] sm:$0xff]
  %v1154 = vld [vmem:[%s2 + $0x40] sm:$0xff]
  %v1155 = vld [vmem:[%s2 + $0x48] sm:$0xff]
  %v1156 = vld [vmem:[%s2 + $0x50] sm:$0xff]
  %v1157 = vld [vmem:[%s2 + $0x58] sm:$0xff]
  %v1158 = vld [vmem:[%s2 + $0x60] sm:$0xff]
  %v1159 = vld [vmem:[%s2 + $0x68] sm:$0xff]
  %v1160 = vld [vmem:[%s2 + $0x70] sm:$0xff]
  %v1161 = vld [vmem:[%s2 + $0x78] sm:$0xff]
  %v1162 = vld [vmem:[%s3] sm:$0x1]
  %v1164 = vlaneseq
  %v1165 = vshrl.u32 %v1164, 7
  %v1166 = vsub.s32 0, %v1165
  %v1167 = vrot.slane %v1162, %v1166
  %1169 = vmatprep.subr.mxu0 0.0
  %1170 = vmatpush1.msra.mxu0 %v1146
  %1171 = vmatprep.subr.mxu0 0.0
  %1172 = vmatpush1.msra.mxu0 %v1147
  %1173 = vmatprep.subr.mxu0 0.0
  %1174 = vmatpush1.msra.mxu0 %v1148
  %1175 = vmatprep.subr.mxu0 0.0
  %1176 = vmatpush1.msra.mxu0 %v1149
  %1177 = vmatprep.subr.mxu0 0.0
  %1178 = vmatpush1.msra.mxu0 %v1150
  %1179 = vmatprep.subr.mxu0 0.0
  %1180 = vmatpush1.msra.mxu0 %v1151
  %1181 = vmatprep.subr.mxu0 0.0
  %1182 = vmatpush1.msra.mxu0 %v1152
  %1183 = vmatprep.subr.mxu0 0.0
  %1184 = vmatpush1.msra.mxu0 %v1153
  %1185 = vmatprep.subr.mxu0 0.0
  %1186 = vmatpush1.msra.mxu0 %v1154
  %1187 = vmatprep.subr.mxu0 0.0
  %1188 = vmatpush1.msra.mxu0 %v1155
  %1189 = vmatprep.subr.mxu0 0.0
  %1190 = vmatpush1.msra.mxu0 %v1156
  %1191 = vmatprep.subr.mxu0 0.0
  %1192 = vmatpush1.msra.mxu0 %v1157
  %1193 = vmatprep.subr.mxu0 0.0
  %1194 = vmatpush1.msra.mxu0 %v1158
  %1195 = vmatprep.subr.mxu0 0.0
  %1196 = vmatpush1.msra.mxu0 %v1159
  %1197 = vmatprep.subr.mxu0 0.0
  %1198 = vmatpush1.msra.mxu0 %v1160
  %1199 = vmatprep.subr.mxu0 0.0
  %1200 = vmatpush1.msra.mxu0 %v1161
  %1201 = vmatprep.subr.mxu0 0.0
  %1202 = vmatpush1.msra.mxu0 0.0
  %1203 = vmatprep.subr.mxu0 0.0
  %1204 = vmatpush1.msra.mxu0 0.0
  %1205 = vmatprep.subr.mxu0 0.0
  %1206 = vmatpush1.msra.mxu0 0.0
  %1207 = vmatprep.subr.mxu0 0.0
  %1208 = vmatpush1.msra.mxu0 0.0
  %1209 = vmatprep.subr.mxu0 0.0
  %1210 = vmatpush1.msra.mxu0 0.0
  %1211 = vmatprep.subr.mxu0 0.0
  %1212 = vmatpush1.msra.mxu0 0.0
  %1213 = vmatprep.subr.mxu0 0.0
  %1214 = vmatpush1.msra.mxu0 0.0
  %1215 = vmatprep.subr.mxu0 0.0
  %1216 = vmatpush1.msra.mxu0 0.0
  %1217 = vmatprep.subr.mxu0 0.0
  %1218 = vmatpush1.msra.mxu0 0.0
  %1219 = vmatprep.subr.mxu0 0.0
  %1220 = vmatpush1.msra.mxu0 0.0
  %1221 = vmatprep.subr.mxu0 0.0
  %1222 = vmatpush1.msra.mxu0 0.0
  %1223 = vmatprep.subr.mxu0 0.0
  %1224 = vmatpush1.msra.mxu0 0.0
  %1225 = vmatprep.subr.mxu0 0.0
  %1226 = vmatpush1.msra.mxu0 0.0
  %1227 = vmatprep.subr.mxu0 0.0
  %1228 = vmatpush1.msra.mxu0 0.0
  %1229 = vmatprep.subr.mxu0 0.0
  %1230 = vmatpush1.msra.mxu0 0.0
  %1231 = vmatprep.subr.mxu0 0.0
  %1232 = vmatpush1.msra.mxu0 0.0
  %1233 = vmatprep.mubr.f32.mxu0 0.0
  %1234 = vmatmul.mubr.f32.gmra.mrb[0].mxu0 %v1145
  %v1235 = vpop.f32.mrb[0].mxu0
  %v1236 = vadd.f32 %v1167, %v1235
  %v1237 = vpop.f32.mrb[0].mxu0
  %1238 = vdwg.mxu0
  %vm1239 = vcmp.gt.f32.partialorder %v1236, 0.0
  %v1240 = vsel %vm1239, 1, 0
  %v1241 = vcvt.s32.f32 %v1240
  %s1242 = scalar_lea.vmem %s4, 48
  %1243 = vst [vmem:[%s1242] sm:$0xff] %v1241
  %s1244 = scalar_lea.vmem %s0, 56
  %v1245 = vld [vmem:[%s1244] sm:$0xff]
  %v1246 = vld [vmem:[%s1] sm:$0xff]
  %v1247 = vld [vmem:[%s1 + $0x8] sm:$0xff]
  %v1248 = vld [vmem:[%s1 + $0x10] sm:$0xff]
  %v1249 = vld [vmem:[%s1 + $0x18] sm:$0xff]
  %v1250 = vld [vmem:[%s1 + $0x20] sm:$0xff]
  %v1251 = vld [vmem:[%s1 + $0x28] sm:$0xff]
  %v1252 = vld [vmem:[%s1 + $0x30] sm:$0xff]
  %v1253 = vld [vmem:[%s1 + $0x38] sm:$0xff]
  %v1254 = vld [vmem:[%s1 + $0x40] sm:$0xff]
  %v1255 = vld [vmem:[%s1 + $0x48] sm:$0xff]
  %v1256 = vld [vmem:[%s1 + $0x50] sm:$0xff]
  %v1257 = vld [vmem:[%s1 + $0x58] sm:$0xff]
  %v1258 = vld [vmem:[%s1 + $0x60] sm:$0xff]
  %v1259 = vld [vmem:[%s1 + $0x68] sm:$0xff]
  %v1260 = vld [vmem:[%s1 + $0x70] sm:$0xff]
  %v1261 = vld [vmem:[%s1 + $0x78] sm:$0xff]
  %1262 = vmatprep.subr.mxu0 0.0
  %1263 = vmatpush1.msra.mxu0 %v1246
  %1264 = vmatprep.subr.mxu0 0.0
  %1265 = vmatpush1.msra.mxu0 %v1247
  %1266 = vmatprep.subr.mxu0 0.0
  %1267 = vmatpush1.msra.mxu0 %v1248
  %1268 = vmatprep.subr.mxu0 0.0
  %1269 = vmatpush1.msra.mxu0 %v1249
  %1270 = vmatprep.subr.mxu0 0.0
  %1271 = vmatpush1.msra.mxu0 %v1250
  %1272 = vmatprep.subr.mxu0 0.0
  %1273 = vmatpush1.msra.mxu0 %v1251
  %1274 = vmatprep.subr.mxu0 0.0
  %1275 = vmatpush1.msra.mxu0 %v1252
  %1276 = vmatprep.subr.mxu0 0.0
  %1277 = vmatpush1.msra.mxu0 %v1253
  %1278 = vmatprep.subr.mxu0 0.0
  %1279 = vmatpush1.msra.mxu0 %v1254
  %1280 = vmatprep.subr.mxu0 0.0
  %1281 = vmatpush1.msra.mxu0 %v1255
  %1282 = vmatprep.subr.mxu0 0.0
  %1283 = vmatpush1.msra.mxu0 %v1256
  %1284 = vmatprep.subr.mxu0 0.0
  %1285 = vmatpush1.msra.mxu0 %v1257
  %1286 = vmatprep.subr.mxu0 0.0
  %1287 = vmatpush1.msra.mxu0 %v1258
  %1288 = vmatprep.subr.mxu0 0.0
  %1289 = vmatpush1.msra.mxu0 %v1259
  %1290 = vmatprep.subr.mxu0 0.0
  %1291 = vmatpush1.msra.mxu0 %v1260
  %1292 = vmatprep.subr.mxu0 0.0
  %1293 = vmatpush1.msra.mxu0 %v1261
  %1294 = vmatprep.subr.mxu0 0.0
  %1295 = vmatpush1.msra.mxu0 0.0
  %1296 = vmatprep.subr.mxu0 0.0
  %1297 = vmatpush1.msra.mxu0 0.0
  %1298 = vmatprep.subr.mxu0 0.0
  %1299 = vmatpush1.msra.mxu0 0.0
  %1300 = vmatprep.subr.mxu0 0.0
  %1301 = vmatpush1.msra.mxu0 0.0
  %1302 = vmatprep.subr.mxu0 0.0
  %1303 = vmatpush1.msra.mxu0 0.0
  %1304 = vmatprep.subr.mxu0 0.0
  %1305 = vmatpush1.msra.mxu0 0.0
  %1306 = vmatprep.subr.mxu0 0.0
  %1307 = vmatpush1.msra.mxu0 0.0
  %1308 = vmatprep.subr.mxu0 0.0
  %1309 = vmatpush1.msra.mxu0 0.0
  %1310 = vmatprep.subr.mxu0 0.0
  %1311 = vmatpush1.msra.mxu0 0.0
  %1312 = vmatprep.subr.mxu0 0.0
  %1313 = vmatpush1.msra.mxu0 0.0
  %1314 = vmatprep.subr.mxu0 0.0
  %1315 = vmatpush1.msra.mxu0 0.0
  %1316 = vmatprep.subr.mxu0 0.0
  %1317 = vmatpush1.msra.mxu0 0.0
  %1318 = vmatprep.subr.mxu0 0.0
  %1319 = vmatpush1.msra.mxu0 0.0
  %1320 = vmatprep.subr.mxu0 0.0
  %1321 = vmatpush1.msra.mxu0 0.0
  %1322 = vmatprep.subr.mxu0 0.0
  %1323 = vmatpush1.msra.mxu0 0.0
  %1324 = vmatprep.subr.mxu0 0.0
  %1325 = vmatpush1.msra.mxu0 0.0
  %1326 = vmatprep.mubr.f32.mxu0 0.0
  %1327 = vmatmul.mubr.f32.gmra.mrb[0].mxu0 %v1241
  %v1328 = vpop.f32.mrb[0].mxu0
  %v1329 = vadd.f32 0.0, %v1328
  %v1330 = vpop.f32.mrb[0].mxu0
  %1331 = vdwg.mxu0
  %v1332 = vadd.f32 %v1245, %v1329
  %v1333 = vtanh.pop %v1332
  %v1334 = vld [vmem:[%s2] sm:$0xff]
  %v1335 = vld [vmem:[%s2 + $0x8] sm:$0xff]
  %v1336 = vld [vmem:[%s2 + $0x10] sm:$0xff]
  %v1337 = vld [vmem:[%s2 + $0x18] sm:$0xff]
  %v1338 = vld [vmem:[%s2 + $0x20] sm:$0xff]
  %v1339 = vld [vmem:[%s2 + $0x28] sm:$0xff]
  %v1340 = vld [vmem:[%s2 + $0x30] sm:$0xff]
  %v1341 = vld [vmem:[%s2 + $0x38] sm:$0xff]
  %v1342 = vld [vmem:[%s2 + $0x40] sm:$0xff]
  %v1343 = vld [vmem:[%s2 + $0x48] sm:$0xff]
  %v1344 = vld [vmem:[%s2 + $0x50] sm:$0xff]
  %v1345 = vld [vmem:[%s2 + $0x58] sm:$0xff]
  %v1346 = vld [vmem:[%s2 + $0x60] sm:$0xff]
  %v1347 = vld [vmem:[%s2 + $0x68] sm:$0xff]
  %v1348 = vld [vmem:[%s2 + $0x70] sm:$0xff]
  %v1349 = vld [vmem:[%s2 + $0x78] sm:$0xff]
  %v1350 = vld [vmem:[%s3] sm:$0x1]
  %v1352 = vlaneseq
  %v1353 = vshrl.u32 %v1352, 7
  %v1354 = vsub.s32 0, %v1353
  %v1355 = vrot.slane %v1350, %v1354
  %1357 = vmatprep.subr.mxu0 0.0
  %1358 = vmatpush1.msra.mxu0 %v1334
  %1359 = vmatprep.subr.mxu0 0.0
  %1360 = vmatpush1.msra.mxu0 %v1335
  %1361 = vmatprep.subr.mxu0 0.0
  %1362 = vmatpush1.msra.mxu0 %v1336
  %1363 = vmatprep.subr.mxu0 0.0
  %1364 = vmatpush1.msra.mxu0 %v1337
  %1365 = vmatprep.subr.mxu0 0.0
  %1366 = vmatpush1.msra.mxu0 %v1338
  %1367 = vmatprep.subr.mxu0 0.0
  %1368 = vmatpush1.msra.mxu0 %v1339
  %1369 = vmatprep.subr.mxu0 0.0
  %1370 = vmatpush1.msra.mxu0 %v1340
  %1371 = vmatprep.subr.mxu0 0.0
  %1372 = vmatpush1.msra.mxu0 %v1341
  %1373 = vmatprep.subr.mxu0 0.0
  %1374 = vmatpush1.msra.mxu0 %v1342
  %1375 = vmatprep.subr.mxu0 0.0
  %1376 = vmatpush1.msra.mxu0 %v1343
  %1377 = vmatprep.subr.mxu0 0.0
  %1378 = vmatpush1.msra.mxu0 %v1344
  %1379 = vmatprep.subr.mxu0 0.0
  %1380 = vmatpush1.msra.mxu0 %v1345
  %1381 = vmatprep.subr.mxu0 0.0
  %1382 = vmatpush1.msra.mxu0 %v1346
  %1383 = vmatprep.subr.mxu0 0.0
  %1384 = vmatpush1.msra.mxu0 %v1347
  %1385 = vmatprep.subr.mxu0 0.0
  %1386 = vmatpush1.msra.mxu0 %v1348
  %1387 = vmatprep.subr.mxu0 0.0
  %1388 = vmatpush1.msra.mxu0 %v1349
  %1389 = vmatprep.subr.mxu0 0.0
  %1390 = vmatpush1.msra.mxu0 0.0
  %1391 = vmatprep.subr.mxu0 0.0
  %1392 = vmatpush1.msra.mxu0 0.0
  %1393 = vmatprep.subr.mxu0 0.0
  %1394 = vmatpush1.msra.mxu0 0.0
  %1395 = vmatprep.subr.mxu0 0.0
  %1396 = vmatpush1.msra.mxu0 0.0
  %1397 = vmatprep.subr.mxu0 0.0
  %1398 = vmatpush1.msra.mxu0 0.0
  %1399 = vmatprep.subr.mxu0 0.0
  %1400 = vmatpush1.msra.mxu0 0.0
  %1401 = vmatprep.subr.mxu0 0.0
  %1402 = vmatpush1.msra.mxu0 0.0
  %1403 = vmatprep.subr.mxu0 0.0
  %1404 = vmatpush1.msra.mxu0 0.0
  %1405 = vmatprep.subr.mxu0 0.0
  %1406 = vmatpush1.msra.mxu0 0.0
  %1407 = vmatprep.subr.mxu0 0.0
  %1408 = vmatpush1.msra.mxu0 0.0
  %1409 = vmatprep.subr.mxu0 0.0
  %1410 = vmatpush1.msra.mxu0 0.0
  %1411 = vmatprep.subr.mxu0 0.0
  %1412 = vmatpush1.msra.mxu0 0.0
  %1413 = vmatprep.subr.mxu0 0.0
  %1414 = vmatpush1.msra.mxu0 0.0
  %1415 = vmatprep.subr.mxu0 0.0
  %1416 = vmatpush1.msra.mxu0 0.0
  %1417 = vmatprep.subr.mxu0 0.0
  %1418 = vmatpush1.msra.mxu0 0.0
  %1419 = vmatprep.subr.mxu0 0.0
  %1420 = vmatpush1.msra.mxu0 0.0
  %1421 = vmatprep.mubr.f32.mxu0 0.0
  %1422 = vmatmul.mubr.f32.gmra.mrb[0].mxu0 %v1333
  %v1423 = vpop.f32.mrb[0].mxu0
  %v1424 = vadd.f32 %v1355, %v1423
  %v1425 = vpop.f32.mrb[0].mxu0
  %1426 = vdwg.mxu0
  %vm1427 = vcmp.gt.f32.partialorder %v1424, 0.0
  %v1428 = vsel %vm1427, 1, 0
  %v1429 = vcvt.s32.f32 %v1428
  %s1430 = scalar_lea.vmem %s4, 56
  %1431 = vst [vmem:[%s1430] sm:$0xff] %v1429
  %s1432 = scalar_lea.vmem %s0, 64
  %v1433 = vld [vmem:[%s1432] sm:$0xff]
  %v1434 = vld [vmem:[%s1] sm:$0xff]
  %v1435 = vld [vmem:[%s1 + $0x8] sm:$0xff]
  %v1436 = vld [vmem:[%s1 + $0x10] sm:$0xff]
  %v1437 = vld [vmem:[%s1 + $0x18] sm:$0xff]
  %v1438 = vld [vmem:[%s1 + $0x20] sm:$0xff]
  %v1439 = vld [vmem:[%s1 + $0x28] sm:$0xff]
  %v1440 = vld [vmem:[%s1 + $0x30] sm:$0xff]
  %v1441 = vld [vmem:[%s1 + $0x38] sm:$0xff]
  %v1442 = vld [vmem:[%s1 + $0x40] sm:$0xff]
  %v1443 = vld [vmem:[%s1 + $0x48] sm:$0xff]
  %v1444 = vld [vmem:[%s1 + $0x50] sm:$0xff]
  %v1445 = vld [vmem:[%s1 + $0x58] sm:$0xff]
  %v1446 = vld [vmem:[%s1 + $0x60] sm:$0xff]
  %v1447 = vld [vmem:[%s1 + $0x68] sm:$0xff]
  %v1448 = vld [vmem:[%s1 + $0x70] sm:$0xff]
  %v1449 = vld [vmem:[%s1 + $0x78] sm:$0xff]
  %1450 = vmatprep.subr.mxu0 0.0
  %1451 = vmatpush1.msra.mxu0 %v1434
  %1452 = vmatprep.subr.mxu0 0.0
  %1453 = vmatpush1.msra.mxu0 %v1435
  %1454 = vmatprep.subr.mxu0 0.0
  %1455 = vmatpush1.msra.mxu0 %v1436
  %1456 = vmatprep.subr.mxu0 0.0
  %1457 = vmatpush1.msra.mxu0 %v1437
  %1458 = vmatprep.subr.mxu0 0.0
  %1459 = vmatpush1.msra.mxu0 %v1438
  %1460 = vmatprep.subr.mxu0 0.0
  %1461 = vmatpush1.msra.mxu0 %v1439
  %1462 = vmatprep.subr.mxu0 0.0
  %1463 = vmatpush1.msra.mxu0 %v1440
  %1464 = vmatprep.subr.mxu0 0.0
  %1465 = vmatpush1.msra.mxu0 %v1441
  %1466 = vmatprep.subr.mxu0 0.0
  %1467 = vmatpush1.msra.mxu0 %v1442
  %1468 = vmatprep.subr.mxu0 0.0
  %1469 = vmatpush1.msra.mxu0 %v1443
  %1470 = vmatprep.subr.mxu0 0.0
  %1471 = vmatpush1.msra.mxu0 %v1444
  %1472 = vmatprep.subr.mxu0 0.0
  %1473 = vmatpush1.msra.mxu0 %v1445
  %1474 = vmatprep.subr.mxu0 0.0
  %1475 = vmatpush1.msra.mxu0 %v1446
  %1476 = vmatprep.subr.mxu0 0.0
  %1477 = vmatpush1.msra.mxu0 %v1447
  %1478 = vmatprep.subr.mxu0 0.0
  %1479 = vmatpush1.msra.mxu0 %v1448
  %1480 = vmatprep.subr.mxu0 0.0
  %1481 = vmatpush1.msra.mxu0 %v1449
  %1482 = vmatprep.subr.mxu0 0.0
  %1483 = vmatpush1.msra.mxu0 0.0
  %1484 = vmatprep.subr.mxu0 0.0
  %1485 = vmatpush1.msra.mxu0 0.0
  %1486 = vmatprep.subr.mxu0 0.0
  %1487 = vmatpush1.msra.mxu0 0.0
  %1488 = vmatprep.subr.mxu0 0.0
  %1489 = vmatpush1.msra.mxu0 0.0
  %1490 = vmatprep.subr.mxu0 0.0
  %1491 = vmatpush1.msra.mxu0 0.0
  %1492 = vmatprep.subr.mxu0 0.0
  %1493 = vmatpush1.msra.mxu0 0.0
  %1494 = vmatprep.subr.mxu0 0.0
  %1495 = vmatpush1.msra.mxu0 0.0
  %1496 = vmatprep.subr.mxu0 0.0
  %1497 = vmatpush1.msra.mxu0 0.0
  %1498 = vmatprep.subr.mxu0 0.0
  %1499 = vmatpush1.msra.mxu0 0.0
  %1500 = vmatprep.subr.mxu0 0.0
  %1501 = vmatpush1.msra.mxu0 0.0
  %1502 = vmatprep.subr.mxu0 0.0
  %1503 = vmatpush1.msra.mxu0 0.0
  %1504 = vmatprep.subr.mxu0 0.0
  %1505 = vmatpush1.msra.mxu0 0.0
  %1506 = vmatprep.subr.mxu0 0.0
  %1507 = vmatpush1.msra.mxu0 0.0
  %1508 = vmatprep.subr.mxu0 0.0
  %1509 = vmatpush1.msra.mxu0 0.0
  %1510 = vmatprep.subr.mxu0 0.0
  %1511 = vmatpush1.msra.mxu0 0.0
  %1512 = vmatprep.subr.mxu0 0.0
  %1513 = vmatpush1.msra.mxu0 0.0
  %1514 = vmatprep.mubr.f32.mxu0 0.0
  %1515 = vmatmul.mubr.f32.gmra.mrb[0].mxu0 %v1429
  %v1516 = vpop.f32.mrb[0].mxu0
  %v1517 = vadd.f32 0.0, %v1516
  %v1518 = vpop.f32.mrb[0].mxu0
  %1519 = vdwg.mxu0
  %v1520 = vadd.f32 %v1433, %v1517
  %v1521 = vtanh.pop %v1520
  %v1522 = vld [vmem:[%s2] sm:$0xff]
  %v1523 = vld [vmem:[%s2 + $0x8] sm:$0xff]
  %v1524 = vld [vmem:[%s2 + $0x10] sm:$0xff]
  %v1525 = vld [vmem:[%s2 + $0x18] sm:$0xff]
  %v1526 = vld [vmem:[%s2 + $0x20] sm:$0xff]
  %v1527 = vld [vmem:[%s2 + $0x28] sm:$0xff]
  %v1528 = vld [vmem:[%s2 + $0x30] sm:$0xff]
  %v1529 = vld [vmem:[%s2 + $0x38] sm:$0xff]
  %v1530 = vld [vmem:[%s2 + $0x40] sm:$0xff]
  %v1531 = vld [vmem:[%s2 + $0x48] sm:$0xff]
  %v1532 = vld [vmem:[%s2 + $0x50] sm:$0xff]
  %v1533 = vld [vmem:[%s2 + $0x58] sm:$0xff]
  %v1534 = vld [vmem:[%s2 + $0x60] sm:$0xff]
  %v1535 = vld [vmem:[%s2 + $0x68] sm:$0xff]
  %v1536 = vld [vmem:[%s2 + $0x70] sm:$0xff]
  %v1537 = vld [vmem:[%s2 + $0x78] sm:$0xff]
  %v1538 = vld [vmem:[%s3] sm:$0x1]
  %v1540 = vlaneseq
  %v1541 = vshrl.u32 %v1540, 7
  %v1542 = vsub.s32 0, %v1541
  %v1543 = vrot.slane %v1538, %v1542
  %1545 = vmatprep.subr.mxu0 0.0
  %1546 = vmatpush1.msra.mxu0 %v1522
  %1547 = vmatprep.subr.mxu0 0.0
  %1548 = vmatpush1.msra.mxu0 %v1523
  %1549 = vmatprep.subr.mxu0 0.0
  %1550 = vmatpush1.msra.mxu0 %v1524
  %1551 = vmatprep.subr.mxu0 0.0
  %1552 = vmatpush1.msra.mxu0 %v1525
  %1553 = vmatprep.subr.mxu0 0.0
  %1554 = vmatpush1.msra.mxu0 %v1526
  %1555 = vmatprep.subr.mxu0 0.0
  %1556 = vmatpush1.msra.mxu0 %v1527
  %1557 = vmatprep.subr.mxu0 0.0
  %1558 = vmatpush1.msra.mxu0 %v1528
  %1559 = vmatprep.subr.mxu0 0.0
  %1560 = vmatpush1.msra.mxu0 %v1529
  %1561 = vmatprep.subr.mxu0 0.0
  %1562 = vmatpush1.msra.mxu0 %v1530
  %1563 = vmatprep.subr.mxu0 0.0
  %1564 = vmatpush1.msra.mxu0 %v1531
  %1565 = vmatprep.subr.mxu0 0.0
  %1566 = vmatpush1.msra.mxu0 %v1532
  %1567 = vmatprep.subr.mxu0 0.0
  %1568 = vmatpush1.msra.mxu0 %v1533
  %1569 = vmatprep.subr.mxu0 0.0
  %1570 = vmatpush1.msra.mxu0 %v1534
  %1571 = vmatprep.subr.mxu0 0.0
  %1572 = vmatpush1.msra.mxu0 %v1535
  %1573 = vmatprep.subr.mxu0 0.0
  %1574 = vmatpush1.msra.mxu0 %v1536
  %1575 = vmatprep.subr.mxu0 0.0
  %1576 = vmatpush1.msra.mxu0 %v1537
  %1577 = vmatprep.subr.mxu0 0.0
  %1578 = vmatpush1.msra.mxu0 0.0
  %1579 = vmatprep.subr.mxu0 0.0
  %1580 = vmatpush1.msra.mxu0 0.0
  %1581 = vmatprep.subr.mxu0 0.0
  %1582 = vmatpush1.msra.mxu0 0.0
  %1583 = vmatprep.subr.mxu0 0.0
  %1584 = vmatpush1.msra.mxu0 0.0
  %1585 = vmatprep.subr.mxu0 0.0
  %1586 = vmatpush1.msra.mxu0 0.0
  %1587 = vmatprep.subr.mxu0 0.0
  %1588 = vmatpush1.msra.mxu0 0.0
  %1589 = vmatprep.subr.mxu0 0.0
  %1590 = vmatpush1.msra.mxu0 0.0
  %1591 = vmatprep.subr.mxu0 0.0
  %1592 = vmatpush1.msra.mxu0 0.0
  %1593 = vmatprep.subr.mxu0 0.0
  %1594 = vmatpush1.msra.mxu0 0.0
  %1595 = vmatprep.subr.mxu0 0.0
  %1596 = vmatpush1.msra.mxu0 0.0
  %1597 = vmatprep.subr.mxu0 0.0
  %1598 = vmatpush1.msra.mxu0 0.0
  %1599 = vmatprep.subr.mxu0 0.0
  %1600 = vmatpush1.msra.mxu0 0.0
  %1601 = vmatprep.subr.mxu0 0.0
  %1602 = vmatpush1.msra.mxu0 0.0
  %1603 = vmatprep.subr.mxu0 0.0
  %1604 = vmatpush1.msra.mxu0 0.0
  %1605 = vmatprep.subr.mxu0 0.0
  %1606 = vmatpush1.msra.mxu0 0.0
  %1607 = vmatprep.subr.mxu0 0.0
  %1608 = vmatpush1.msra.mxu0 0.0
  %1609 = vmatprep.mubr.f32.mxu0 0.0
  %1610 = vmatmul.mubr.f32.gmra.mrb[0].mxu0 %v1521
  %v1611 = vpop.f32.mrb[0].mxu0
  %v1612 = vadd.f32 %v1543, %v1611
  %v1613 = vpop.f32.mrb[0].mxu0
  %1614 = vdwg.mxu0
  %vm1615 = vcmp.gt.f32.partialorder %v1612, 0.0
  %v1616 = vsel %vm1615, 1, 0
  %v1617 = vcvt.s32.f32 %v1616
  %s1618 = scalar_lea.vmem %s4, 64
  %1619 = vst [vmem:[%s1618] sm:$0xff] %v1617
  %s1620 = scalar_lea.vmem %s0, 72
  %v1621 = vld [vmem:[%s1620] sm:$0xff]
  %v1622 = vld [vmem:[%s1] sm:$0xff]
  %v1623 = vld [vmem:[%s1 + $0x8] sm:$0xff]
  %v1624 = vld [vmem:[%s1 + $0x10] sm:$0xff]
  %v1625 = vld [vmem:[%s1 + $0x18] sm:$0xff]
  %v1626 = vld [vmem:[%s1 + $0x20] sm:$0xff]
  %v1627 = vld [vmem:[%s1 + $0x28] sm:$0xff]
  %v1628 = vld [vmem:[%s1 + $0x30] sm:$0xff]
  %v1629 = vld [vmem:[%s1 + $0x38] sm:$0xff]
  %v1630 = vld [vmem:[%s1 + $0x40] sm:$0xff]
  %v1631 = vld [vmem:[%s1 + $0x48] sm:$0xff]
  %v1632 = vld [vmem:[%s1 + $0x50] sm:$0xff]
  %v1633 = vld [vmem:[%s1 + $0x58] sm:$0xff]
  %v1634 = vld [vmem:[%s1 + $0x60] sm:$0xff]
  %v1635 = vld [vmem:[%s1 + $0x68] sm:$0xff]
  %v1636 = vld [vmem:[%s1 + $0x70] sm:$0xff]
  %v1637 = vld [vmem:[%s1 + $0x78] sm:$0xff]
  %1638 = vmatprep.subr.mxu0 0.0
  %1639 = vmatpush1.msra.mxu0 %v1622
  %1640 = vmatprep.subr.mxu0 0.0
  %1641 = vmatpush1.msra.mxu0 %v1623
  %1642 = vmatprep.subr.mxu0 0.0
  %1643 = vmatpush1.msra.mxu0 %v1624
  %1644 = vmatprep.subr.mxu0 0.0
  %1645 = vmatpush1.msra.mxu0 %v1625
  %1646 = vmatprep.subr.mxu0 0.0
  %1647 = vmatpush1.msra.mxu0 %v1626
  %1648 = vmatprep.subr.mxu0 0.0
  %1649 = vmatpush1.msra.mxu0 %v1627
  %1650 = vmatprep.subr.mxu0 0.0
  %1651 = vmatpush1.msra.mxu0 %v1628
  %1652 = vmatprep.subr.mxu0 0.0
  %1653 = vmatpush1.msra.mxu0 %v1629
  %1654 = vmatprep.subr.mxu0 0.0
  %1655 = vmatpush1.msra.mxu0 %v1630
  %1656 = vmatprep.subr.mxu0 0.0
  %1657 = vmatpush1.msra.mxu0 %v1631
  %1658 = vmatprep.subr.mxu0 0.0
  %1659 = vmatpush1.msra.mxu0 %v1632
  %1660 = vmatprep.subr.mxu0 0.0
  %1661 = vmatpush1.msra.mxu0 %v1633
  %1662 = vmatprep.subr.mxu0 0.0
  %1663 = vmatpush1.msra.mxu0 %v1634
  %1664 = vmatprep.subr.mxu0 0.0
  %1665 = vmatpush1.msra.mxu0 %v1635
  %1666 = vmatprep.subr.mxu0 0.0
  %1667 = vmatpush1.msra.mxu0 %v1636
  %1668 = vmatprep.subr.mxu0 0.0
  %1669 = vmatpush1.msra.mxu0 %v1637
  %1670 = vmatprep.subr.mxu0 0.0
  %1671 = vmatpush1.msra.mxu0 0.0
  %1672 = vmatprep.subr.mxu0 0.0
  %1673 = vmatpush1.msra.mxu0 0.0
  %1674 = vmatprep.subr.mxu0 0.0
  %1675 = vmatpush1.msra.mxu0 0.0
  %1676 = vmatprep.subr.mxu0 0.0
  %1677 = vmatpush1.msra.mxu0 0.0
  %1678 = vmatprep.subr.mxu0 0.0
  %1679 = vmatpush1.msra.mxu0 0.0
  %1680 = vmatprep.subr.mxu0 0.0
  %1681 = vmatpush1.msra.mxu0 0.0
  %1682 = vmatprep.subr.mxu0 0.0
  %1683 = vmatpush1.msra.mxu0 0.0
  %1684 = vmatprep.subr.mxu0 0.0
  %1685 = vmatpush1.msra.mxu0 0.0
  %1686 = vmatprep.subr.mxu0 0.0
  %1687 = vmatpush1.msra.mxu0 0.0
  %1688 = vmatprep.subr.mxu0 0.0
  %1689 = vmatpush1.msra.mxu0 0.0
  %1690 = vmatprep.subr.mxu0 0.0
  %1691 = vmatpush1.msra.mxu0 0.0
  %1692 = vmatprep.subr.mxu0 0.0
  %1693 = vmatpush1.msra.mxu0 0.0
  %1694 = vmatprep.subr.mxu0 0.0
  %1695 = vmatpush1.msra.mxu0 0.0
  %1696 = vmatprep.subr.mxu0 0.0
  %1697 = vmatpush1.msra.mxu0 0.0
  %1698 = vmatprep.subr.mxu0 0.0
  %1699 = vmatpush1.msra.mxu0 0.0
  %1700 = vmatprep.subr.mxu0 0.0
  %1701 = vmatpush1.msra.mxu0 0.0
  %1702 = vmatprep.mubr.f32.mxu0 0.0
  %1703 = vmatmul.mubr.f32.gmra.mrb[0].mxu0 %v1617
  %v1704 = vpop.f32.mrb[0].mxu0
  %v1705 = vadd.f32 0.0, %v1704
  %v1706 = vpop.f32.mrb[0].mxu0
  %1707 = vdwg.mxu0
  %v1708 = vadd.f32 %v1621, %v1705
  %v1709 = vtanh.pop %v1708
  %v1710 = vld [vmem:[%s2] sm:$0xff]
  %v1711 = vld [vmem:[%s2 + $0x8] sm:$0xff]
  %v1712 = vld [vmem:[%s2 + $0x10] sm:$0xff]
  %v1713 = vld [vmem:[%s2 + $0x18] sm:$0xff]
  %v1714 = vld [vmem:[%s2 + $0x20] sm:$0xff]
  %v1715 = vld [vmem:[%s2 + $0x28] sm:$0xff]
  %v1716 = vld [vmem:[%s2 + $0x30] sm:$0xff]
  %v1717 = vld [vmem:[%s2 + $0x38] sm:$0xff]
  %v1718 = vld [vmem:[%s2 + $0x40] sm:$0xff]
  %v1719 = vld [vmem:[%s2 + $0x48] sm:$0xff]
  %v1720 = vld [vmem:[%s2 + $0x50] sm:$0xff]
  %v1721 = vld [vmem:[%s2 + $0x58] sm:$0xff]
  %v1722 = vld [vmem:[%s2 + $0x60] sm:$0xff]
  %v1723 = vld [vmem:[%s2 + $0x68] sm:$0xff]
  %v1724 = vld [vmem:[%s2 + $0x70] sm:$0xff]
  %v1725 = vld [vmem:[%s2 + $0x78] sm:$0xff]
  %v1726 = vld [vmem:[%s3] sm:$0x1]
  %v1728 = vlaneseq
  %v1729 = vshrl.u32 %v1728, 7
  %v1730 = vsub.s32 0, %v1729
  %v1731 = vrot.slane %v1726, %v1730
  %1733 = vmatprep.subr.mxu0 0.0
  %1734 = vmatpush1.msra.mxu0 %v1710
  %1735 = vmatprep.subr.mxu0 0.0
  %1736 = vmatpush1.msra.mxu0 %v1711
  %1737 = vmatprep.subr.mxu0 0.0
  %1738 = vmatpush1.msra.mxu0 %v1712
  %1739 = vmatprep.subr.mxu0 0.0
  %1740 = vmatpush1.msra.mxu0 %v1713
  %1741 = vmatprep.subr.mxu0 0.0
  %1742 = vmatpush1.msra.mxu0 %v1714
  %1743 = vmatprep.subr.mxu0 0.0
  %1744 = vmatpush1.msra.mxu0 %v1715
  %1745 = vmatprep.subr.mxu0 0.0
  %1746 = vmatpush1.msra.mxu0 %v1716
  %1747 = vmatprep.subr.mxu0 0.0
  %1748 = vmatpush1.msra.mxu0 %v1717
  %1749 = vmatprep.subr.mxu0 0.0
  %1750 = vmatpush1.msra.mxu0 %v1718
  %1751 = vmatprep.subr.mxu0 0.0
  %1752 = vmatpush1.msra.mxu0 %v1719
  %1753 = vmatprep.subr.mxu0 0.0
  %1754 = vmatpush1.msra.mxu0 %v1720
  %1755 = vmatprep.subr.mxu0 0.0
  %1756 = vmatpush1.msra.mxu0 %v1721
  %1757 = vmatprep.subr.mxu0 0.0
  %1758 = vmatpush1.msra.mxu0 %v1722
  %1759 = vmatprep.subr.mxu0 0.0
  %1760 = vmatpush1.msra.mxu0 %v1723
  %1761 = vmatprep.subr.mxu0 0.0
  %1762 = vmatpush1.msra.mxu0 %v1724
  %1763 = vmatprep.subr.mxu0 0.0
  %1764 = vmatpush1.msra.mxu0 %v1725
  %1765 = vmatprep.subr.mxu0 0.0
  %1766 = vmatpush1.msra.mxu0 0.0
  %1767 = vmatprep.subr.mxu0 0.0
  %1768 = vmatpush1.msra.mxu0 0.0
  %1769 = vmatprep.subr.mxu0 0.0
  %1770 = vmatpush1.msra.mxu0 0.0
  %1771 = vmatprep.subr.mxu0 0.0
  %1772 = vmatpush1.msra.mxu0 0.0
  %1773 = vmatprep.subr.mxu0 0.0
  %1774 = vmatpush1.msra.mxu0 0.0
  %1775 = vmatprep.subr.mxu0 0.0
  %1776 = vmatpush1.msra.mxu0 0.0
  %1777 = vmatprep.subr.mxu0 0.0
  %1778 = vmatpush1.msra.mxu0 0.0
  %1779 = vmatprep.subr.mxu0 0.0
  %1780 = vmatpush1.msra.mxu0 0.0
  %1781 = vmatprep.subr.mxu0 0.0
  %1782 = vmatpush1.msra.mxu0 0.0
  %1783 = vmatprep.subr.mxu0 0.0
  %1784 = vmatpush1.msra.mxu0 0.0
  %1785 = vmatprep.subr.mxu0 0.0
  %1786 = vmatpush1.msra.mxu0 0.0
  %1787 = vmatprep.subr.mxu0 0.0
  %1788 = vmatpush1.msra.mxu0 0.0
  %1789 = vmatprep.subr.mxu0 0.0
  %1790 = vmatpush1.msra.mxu0 0.0
  %1791 = vmatprep.subr.mxu0 0.0
  %1792 = vmatpush1.msra.mxu0 0.0
  %1793 = vmatprep.subr.mxu0 0.0
  %1794 = vmatpush1.msra.mxu0 0.0
  %1795 = vmatprep.subr.mxu0 0.0
  %1796 = vmatpush1.msra.mxu0 0.0
  %1797 = vmatprep.mubr.f32.mxu0 0.0
  %1798 = vmatmul.mubr.f32.gmra.mrb[0].mxu0 %v1709
  %v1799 = vpop.f32.mrb[0].mxu0
  %v1800 = vadd.f32 %v1731, %v1799
  %v1801 = vpop.f32.mrb[0].mxu0
  %1802 = vdwg.mxu0
  %vm1803 = vcmp.gt.f32.partialorder %v1800, 0.0
  %v1804 = vsel %vm1803, 1, 0
  %v1805 = vcvt.s32.f32 %v1804
  %s1806 = scalar_lea.vmem %s4, 72
  %1807 = vst [vmem:[%s1806] sm:$0xff] %v1805
  %s1808 = scalar_lea.vmem %s0, 80
  %v1809 = vld [vmem:[%s1808] sm:$0xff]
  %v1810 = vld [vmem:[%s1] sm:$0xff]
  %v1811 = vld [vmem:[%s1 + $0x8] sm:$0xff]
  %v1812 = vld [vmem:[%s1 + $0x10] sm:$0xff]
  %v1813 = vld [vmem:[%s1 + $0x18] sm:$0xff]
  %v1814 = vld [vmem:[%s1 + $0x20] sm:$0xff]
  %v1815 = vld [vmem:[%s1 + $0x28] sm:$0xff]
  %v1816 = vld [vmem:[%s1 + $0x30] sm:$0xff]
  %v1817 = vld [vmem:[%s1 + $0x38] sm:$0xff]
  %v1818 = vld [vmem:[%s1 + $0x40] sm:$0xff]
  %v1819 = vld [vmem:[%s1 + $0x48] sm:$0xff]
  %v1820 = vld [vmem:[%s1 + $0x50] sm:$0xff]
  %v1821 = vld [vmem:[%s1 + $0x58] sm:$0xff]
  %v1822 = vld [vmem:[%s1 + $0x60] sm:$0xff]
  %v1823 = vld [vmem:[%s1 + $0x68] sm:$0xff]
  %v1824 = vld [vmem:[%s1 + $0x70] sm:$0xff]
  %v1825 = vld [vmem:[%s1 + $0x78] sm:$0xff]
  %1826 = vmatprep.subr.mxu0 0.0
  %1827 = vmatpush1.msra.mxu0 %v1810
  %1828 = vmatprep.subr.mxu0 0.0
  %1829 = vmatpush1.msra.mxu0 %v1811
  %1830 = vmatprep.subr.mxu0 0.0
  %1831 = vmatpush1.msra.mxu0 %v1812
  %1832 = vmatprep.subr.mxu0 0.0
  %1833 = vmatpush1.msra.mxu0 %v1813
  %1834 = vmatprep.subr.mxu0 0.0
  %1835 = vmatpush1.msra.mxu0 %v1814
  %1836 = vmatprep.subr.mxu0 0.0
  %1837 = vmatpush1.msra.mxu0 %v1815
  %1838 = vmatprep.subr.mxu0 0.0
  %1839 = vmatpush1.msra.mxu0 %v1816
  %1840 = vmatprep.subr.mxu0 0.0
  %1841 = vmatpush1.msra.mxu0 %v1817
  %1842 = vmatprep.subr.mxu0 0.0
  %1843 = vmatpush1.msra.mxu0 %v1818
  %1844 = vmatprep.subr.mxu0 0.0
  %1845 = vmatpush1.msra.mxu0 %v1819
  %1846 = vmatprep.subr.mxu0 0.0
  %1847 = vmatpush1.msra.mxu0 %v1820
  %1848 = vmatprep.subr.mxu0 0.0
  %1849 = vmatpush1.msra.mxu0 %v1821
  %1850 = vmatprep.subr.mxu0 0.0
  %1851 = vmatpush1.msra.mxu0 %v1822
  %1852 = vmatprep.subr.mxu0 0.0
  %1853 = vmatpush1.msra.mxu0 %v1823
  %1854 = vmatprep.subr.mxu0 0.0
  %1855 = vmatpush1.msra.mxu0 %v1824
  %1856 = vmatprep.subr.mxu0 0.0
  %1857 = vmatpush1.msra.mxu0 %v1825
  %1858 = vmatprep.subr.mxu0 0.0
  %1859 = vmatpush1.msra.mxu0 0.0
  %1860 = vmatprep.subr.mxu0 0.0
  %1861 = vmatpush1.msra.mxu0 0.0
  %1862 = vmatprep.subr.mxu0 0.0
  %1863 = vmatpush1.msra.mxu0 0.0
  %1864 = vmatprep.subr.mxu0 0.0
  %1865 = vmatpush1.msra.mxu0 0.0
  %1866 = vmatprep.subr.mxu0 0.0
  %1867 = vmatpush1.msra.mxu0 0.0
  %1868 = vmatprep.subr.mxu0 0.0
  %1869 = vmatpush1.msra.mxu0 0.0
  %1870 = vmatprep.subr.mxu0 0.0
  %1871 = vmatpush1.msra.mxu0 0.0
  %1872 = vmatprep.subr.mxu0 0.0
  %1873 = vmatpush1.msra.mxu0 0.0
  %1874 = vmatprep.subr.mxu0 0.0
  %1875 = vmatpush1.msra.mxu0 0.0
  %1876 = vmatprep.subr.mxu0 0.0
  %1877 = vmatpush1.msra.mxu0 0.0
  %1878 = vmatprep.subr.mxu0 0.0
  %1879 = vmatpush1.msra.mxu0 0.0
  %1880 = vmatprep.subr.mxu0 0.0
  %1881 = vmatpush1.msra.mxu0 0.0
  %1882 = vmatprep.subr.mxu0 0.0
  %1883 = vmatpush1.msra.mxu0 0.0
  %1884 = vmatprep.subr.mxu0 0.0
  %1885 = vmatpush1.msra.mxu0 0.0
  %1886 = vmatprep.subr.mxu0 0.0
  %1887 = vmatpush1.msra.mxu0 0.0
  %1888 = vmatprep.subr.mxu0 0.0
  %1889 = vmatpush1.msra.mxu0 0.0
  %1890 = vmatprep.mubr.f32.mxu0 0.0
  %1891 = vmatmul.mubr.f32.gmra.mrb[0].mxu0 %v1805
  %v1892 = vpop.f32.mrb[0].mxu0
  %v1893 = vadd.f32 0.0, %v1892
  %v1894 = vpop.f32.mrb[0].mxu0
  %1895 = vdwg.mxu0
  %v1896 = vadd.f32 %v1809, %v1893
  %v1897 = vtanh.pop %v1896
  %v1898 = vld [vmem:[%s2] sm:$0xff]
  %v1899 = vld [vmem:[%s2 + $0x8] sm:$0xff]
  %v1900 = vld [vmem:[%s2 + $0x10] sm:$0xff]
  %v1901 = vld [vmem:[%s2 + $0x18] sm:$0xff]
  %v1902 = vld [vmem:[%s2 + $0x20] sm:$0xff]
  %v1903 = vld [vmem:[%s2 + $0x28] sm:$0xff]
  %v1904 = vld [vmem:[%s2 + $0x30] sm:$0xff]
  %v1905 = vld [vmem:[%s2 + $0x38] sm:$0xff]
  %v1906 = vld [vmem:[%s2 + $0x40] sm:$0xff]
  %v1907 = vld [vmem:[%s2 + $0x48] sm:$0xff]
  %v1908 = vld [vmem:[%s2 + $0x50] sm:$0xff]
  %v1909 = vld [vmem:[%s2 + $0x58] sm:$0xff]
  %v1910 = vld [vmem:[%s2 + $0x60] sm:$0xff]
  %v1911 = vld [vmem:[%s2 + $0x68] sm:$0xff]
  %v1912 = vld [vmem:[%s2 + $0x70] sm:$0xff]
  %v1913 = vld [vmem:[%s2 + $0x78] sm:$0xff]
  %v1914 = vld [vmem:[%s3] sm:$0x1]
  %v1916 = vlaneseq
  %v1917 = vshrl.u32 %v1916, 7
  %v1918 = vsub.s32 0, %v1917
  %v1919 = vrot.slane %v1914, %v1918
  %1921 = vmatprep.subr.mxu0 0.0
  %1922 = vmatpush1.msra.mxu0 %v1898
  %1923 = vmatprep.subr.mxu0 0.0
  %1924 = vmatpush1.msra.mxu0 %v1899
  %1925 = vmatprep.subr.mxu0 0.0
  %1926 = vmatpush1.msra.mxu0 %v1900
  %1927 = vmatprep.subr.mxu0 0.0
  %1928 = vmatpush1.msra.mxu0 %v1901
  %1929 = vmatprep.subr.mxu0 0.0
  %1930 = vmatpush1.msra.mxu0 %v1902
  %1931 = vmatprep.subr.mxu0 0.0
  %1932 = vmatpush1.msra.mxu0 %v1903
  %1933 = vmatprep.subr.mxu0 0.0
  %1934 = vmatpush1.msra.mxu0 %v1904
  %1935 = vmatprep.subr.mxu0 0.0
  %1936 = vmatpush1.msra.mxu0 %v1905
  %1937 = vmatprep.subr.mxu0 0.0
  %1938 = vmatpush1.msra.mxu0 %v1906
  %1939 = vmatprep.subr.mxu0 0.0
  %1940 = vmatpush1.msra.mxu0 %v1907
  %1941 = vmatprep.subr.mxu0 0.0
  %1942 = vmatpush1.msra.mxu0 %v1908
  %1943 = vmatprep.subr.mxu0 0.0
  %1944 = vmatpush1.msra.mxu0 %v1909
  %1945 = vmatprep.subr.mxu0 0.0
  %1946 = vmatpush1.msra.mxu0 %v1910
  %1947 = vmatprep.subr.mxu0 0.0
  %1948 = vmatpush1.msra.mxu0 %v1911
  %1949 = vmatprep.subr.mxu0 0.0
  %1950 = vmatpush1.msra.mxu0 %v1912
  %1951 = vmatprep.subr.mxu0 0.0
  %1952 = vmatpush1.msra.mxu0 %v1913
  %1953 = vmatprep.subr.mxu0 0.0
  %1954 = vmatpush1.msra.mxu0 0.0
  %1955 = vmatprep.subr.mxu0 0.0
  %1956 = vmatpush1.msra.mxu0 0.0
  %1957 = vmatprep.subr.mxu0 0.0
  %1958 = vmatpush1.msra.mxu0 0.0
  %1959 = vmatprep.subr.mxu0 0.0
  %1960 = vmatpush1.msra.mxu0 0.0
  %1961 = vmatprep.subr.mxu0 0.0
  %1962 = vmatpush1.msra.mxu0 0.0
  %1963 = vmatprep.subr.mxu0 0.0
  %1964 = vmatpush1.msra.mxu0 0.0
  %1965 = vmatprep.subr.mxu0 0.0
  %1966 = vmatpush1.msra.mxu0 0.0
  %1967 = vmatprep.subr.mxu0 0.0
  %1968 = vmatpush1.msra.mxu0 0.0
  %1969 = vmatprep.subr.mxu0 0.0
  %1970 = vmatpush1.msra.mxu0 0.0
  %1971 = vmatprep.subr.mxu0 0.0
  %1972 = vmatpush1.msra.mxu0 0.0
  %1973 = vmatprep.subr.mxu0 0.0
  %1974 = vmatpush1.msra.mxu0 0.0
  %1975 = vmatprep.subr.mxu0 0.0
  %1976 = vmatpush1.msra.mxu0 0.0
  %1977 = vmatprep.subr.mxu0 0.0
  %1978 = vmatpush1.msra.mxu0 0.0
  %1979 = vmatprep.subr.mxu0 0.0
  %1980 = vmatpush1.msra.mxu0 0.0
  %1981 = vmatprep.subr.mxu0 0.0
  %1982 = vmatpush1.msra.mxu0 0.0
  %1983 = vmatprep.subr.mxu0 0.0
  %1984 = vmatpush1.msra.mxu0 0.0
  %1985 = vmatprep.mubr.f32.mxu0 0.0
  %1986 = vmatmul.mubr.f32.gmra.mrb[0].mxu0 %v1897
  %v1987 = vpop.f32.mrb[0].mxu0
  %v1988 = vadd.f32 %v1919, %v1987
  %v1989 = vpop.f32.mrb[0].mxu0
  %1990 = vdwg.mxu0
  %vm1991 = vcmp.gt.f32.partialorder %v1988, 0.0
  %v1992 = vsel %vm1991, 1, 0
  %v1993 = vcvt.s32.f32 %v1992
  %s1994 = scalar_lea.vmem %s4, 80
  %1995 = vst [vmem:[%s1994] sm:$0xff] %v1993
  %s1996 = scalar_lea.vmem %s0, 88
  %v1997 = vld [vmem:[%s1996] sm:$0xff]
  %v1998 = vld [vmem:[%s1] sm:$0xff]
  %v1999 = vld [vmem:[%s1 + $0x8] sm:$0xff]
  %v2000 = vld [vmem:[%s1 + $0x10] sm:$0xff]
  %v2001 = vld [vmem:[%s1 + $0x18] sm:$0xff]
  %v2002 = vld [vmem:[%s1 + $0x20] sm:$0xff]
  %v2003 = vld [vmem:[%s1 + $0x28] sm:$0xff]
  %v2004 = vld [vmem:[%s1 + $0x30] sm:$0xff]
  %v2005 = vld [vmem:[%s1 + $0x38] sm:$0xff]
  %v2006 = vld [vmem:[%s1 + $0x40] sm:$0xff]
  %v2007 = vld [vmem:[%s1 + $0x48] sm:$0xff]
  %v2008 = vld [vmem:[%s1 + $0x50] sm:$0xff]
  %v2009 = vld [vmem:[%s1 + $0x58] sm:$0xff]
  %v2010 = vld [vmem:[%s1 + $0x60] sm:$0xff]
  %v2011 = vld [vmem:[%s1 + $0x68] sm:$0xff]
  %v2012 = vld [vmem:[%s1 + $0x70] sm:$0xff]
  %v2013 = vld [vmem:[%s1 + $0x78] sm:$0xff]
  %2014 = vmatprep.subr.mxu0 0.0
  %2015 = vmatpush1.msra.mxu0 %v1998
  %2016 = vmatprep.subr.mxu0 0.0
  %2017 = vmatpush1.msra.mxu0 %v1999
  %2018 = vmatprep.subr.mxu0 0.0
  %2019 = vmatpush1.msra.mxu0 %v2000
  %2020 = vmatprep.subr.mxu0 0.0
  %2021 = vmatpush1.msra.mxu0 %v2001
  %2022 = vmatprep.subr.mxu0 0.0
  %2023 = vmatpush1.msra.mxu0 %v2002
  %2024 = vmatprep.subr.mxu0 0.0
  %2025 = vmatpush1.msra.mxu0 %v2003
  %2026 = vmatprep.subr.mxu0 0.0
  %2027 = vmatpush1.msra.mxu0 %v2004
  %2028 = vmatprep.subr.mxu0 0.0
  %2029 = vmatpush1.msra.mxu0 %v2005
  %2030 = vmatprep.subr.mxu0 0.0
  %2031 = vmatpush1.msra.mxu0 %v2006
  %2032 = vmatprep.subr.mxu0 0.0
  %2033 = vmatpush1.msra.mxu0 %v2007
  %2034 = vmatprep.subr.mxu0 0.0
  %2035 = vmatpush1.msra.mxu0 %v2008
  %2036 = vmatprep.subr.mxu0 0.0
  %2037 = vmatpush1.msra.mxu0 %v2009
  %2038 = vmatprep.subr.mxu0 0.0
  %2039 = vmatpush1.msra.mxu0 %v2010
  %2040 = vmatprep.subr.mxu0 0.0
  %2041 = vmatpush1.msra.mxu0 %v2011
  %2042 = vmatprep.subr.mxu0 0.0
  %2043 = vmatpush1.msra.mxu0 %v2012
  %2044 = vmatprep.subr.mxu0 0.0
  %2045 = vmatpush1.msra.mxu0 %v2013
  %2046 = vmatprep.subr.mxu0 0.0
  %2047 = vmatpush1.msra.mxu0 0.0
  %2048 = vmatprep.subr.mxu0 0.0
  %2049 = vmatpush1.msra.mxu0 0.0
  %2050 = vmatprep.subr.mxu0 0.0
  %2051 = vmatpush1.msra.mxu0 0.0
  %2052 = vmatprep.subr.mxu0 0.0
  %2053 = vmatpush1.msra.mxu0 0.0
  %2054 = vmatprep.subr.mxu0 0.0
  %2055 = vmatpush1.msra.mxu0 0.0
  %2056 = vmatprep.subr.mxu0 0.0
  %2057 = vmatpush1.msra.mxu0 0.0
  %2058 = vmatprep.subr.mxu0 0.0
  %2059 = vmatpush1.msra.mxu0 0.0
  %2060 = vmatprep.subr.mxu0 0.0
  %2061 = vmatpush1.msra.mxu0 0.0
  %2062 = vmatprep.subr.mxu0 0.0
  %2063 = vmatpush1.msra.mxu0 0.0
  %2064 = vmatprep.subr.mxu0 0.0
  %2065 = vmatpush1.msra.mxu0 0.0
  %2066 = vmatprep.subr.mxu0 0.0
  %2067 = vmatpush1.msra.mxu0 0.0
  %2068 = vmatprep.subr.mxu0 0.0
  %2069 = vmatpush1.msra.mxu0 0.0
  %2070 = vmatprep.subr.mxu0 0.0
  %2071 = vmatpush1.msra.mxu0 0.0
  %2072 = vmatprep.subr.mxu0 0.0
  %2073 = vmatpush1.msra.mxu0 0.0
  %2074 = vmatprep.subr.mxu0 0.0
  %2075 = vmatpush1.msra.mxu0 0.0
  %2076 = vmatprep.subr.mxu0 0.0
  %2077 = vmatpush1.msra.mxu0 0.0
  %2078 = vmatprep.mubr.f32.mxu0 0.0
  %2079 = vmatmul.mubr.f32.gmra.mrb[0].mxu0 %v1993
  %v2080 = vpop.f32.mrb[0].mxu0
  %v2081 = vadd.f32 0.0, %v2080
  %v2082 = vpop.f32.mrb[0].mxu0
  %2083 = vdwg.mxu0
  %v2084 = vadd.f32 %v1997, %v2081
  %v2085 = vtanh.pop %v2084
  %v2086 = vld [vmem:[%s2] sm:$0xff]
  %v2087 = vld [vmem:[%s2 + $0x8] sm:$0xff]
  %v2088 = vld [vmem:[%s2 + $0x10] sm:$0xff]
  %v2089 = vld [vmem:[%s2 + $0x18] sm:$0xff]
  %v2090 = vld [vmem:[%s2 + $0x20] sm:$0xff]
  %v2091 = vld [vmem:[%s2 + $0x28] sm:$0xff]
  %v2092 = vld [vmem:[%s2 + $0x30] sm:$0xff]
  %v2093 = vld [vmem:[%s2 + $0x38] sm:$0xff]
  %v2094 = vld [vmem:[%s2 + $0x40] sm:$0xff]
  %v2095 = vld [vmem:[%s2 + $0x48] sm:$0xff]
  %v2096 = vld [vmem:[%s2 + $0x50] sm:$0xff]
  %v2097 = vld [vmem:[%s2 + $0x58] sm:$0xff]
  %v2098 = vld [vmem:[%s2 + $0x60] sm:$0xff]
  %v2099 = vld [vmem:[%s2 + $0x68] sm:$0xff]
  %v2100 = vld [vmem:[%s2 + $0x70] sm:$0xff]
  %v2101 = vld [vmem:[%s2 + $0x78] sm:$0xff]
  %v2102 = vld [vmem:[%s3] sm:$0x1]
  %v2104 = vlaneseq
  %v2105 = vshrl.u32 %v2104, 7
  %v2106 = vsub.s32 0, %v2105
  %v2107 = vrot.slane %v2102, %v2106
  %2109 = vmatprep.subr.mxu0 0.0
  %2110 = vmatpush1.msra.mxu0 %v2086
  %2111 = vmatprep.subr.mxu0 0.0
  %2112 = vmatpush1.msra.mxu0 %v2087
  %2113 = vmatprep.subr.mxu0 0.0
  %2114 = vmatpush1.msra.mxu0 %v2088
  %2115 = vmatprep.subr.mxu0 0.0
  %2116 = vmatpush1.msra.mxu0 %v2089
  %2117 = vmatprep.subr.mxu0 0.0
  %2118 = vmatpush1.msra.mxu0 %v2090
  %2119 = vmatprep.subr.mxu0 0.0
  %2120 = vmatpush1.msra.mxu0 %v2091
  %2121 = vmatprep.subr.mxu0 0.0
  %2122 = vmatpush1.msra.mxu0 %v2092
  %2123 = vmatprep.subr.mxu0 0.0
  %2124 = vmatpush1.msra.mxu0 %v2093
  %2125 = vmatprep.subr.mxu0 0.0
  %2126 = vmatpush1.msra.mxu0 %v2094
  %2127 = vmatprep.subr.mxu0 0.0
  %2128 = vmatpush1.msra.mxu0 %v2095
  %2129 = vmatprep.subr.mxu0 0.0
  %2130 = vmatpush1.msra.mxu0 %v2096
  %2131 = vmatprep.subr.mxu0 0.0
  %2132 = vmatpush1.msra.mxu0 %v2097
  %2133 = vmatprep.subr.mxu0 0.0
  %2134 = vmatpush1.msra.mxu0 %v2098
  %2135 = vmatprep.subr.mxu0 0.0
  %2136 = vmatpush1.msra.mxu0 %v2099
  %2137 = vmatprep.subr.mxu0 0.0
  %2138 = vmatpush1.msra.mxu0 %v2100
  %2139 = vmatprep.subr.mxu0 0.0
  %2140 = vmatpush1.msra.mxu0 %v2101
  %2141 = vmatprep.subr.mxu0 0.0
  %2142 = vmatpush1.msra.mxu0 0.0
  %2143 = vmatprep.subr.mxu0 0.0
  %2144 = vmatpush1.msra.mxu0 0.0
  %2145 = vmatprep.subr.mxu0 0.0
  %2146 = vmatpush1.msra.mxu0 0.0
  %2147 = vmatprep.subr.mxu0 0.0
  %2148 = vmatpush1.msra.mxu0 0.0
  %2149 = vmatprep.subr.mxu0 0.0
  %2150 = vmatpush1.msra.mxu0 0.0
  %2151 = vmatprep.subr.mxu0 0.0
  %2152 = vmatpush1.msra.mxu0 0.0
  %2153 = vmatprep.subr.mxu0 0.0
  %2154 = vmatpush1.msra.mxu0 0.0
  %2155 = vmatprep.subr.mxu0 0.0
  %2156 = vmatpush1.msra.mxu0 0.0
  %2157 = vmatprep.subr.mxu0 0.0
  %2158 = vmatpush1.msra.mxu0 0.0
  %2159 = vmatprep.subr.mxu0 0.0
  %2160 = vmatpush1.msra.mxu0 0.0
  %2161 = vmatprep.subr.mxu0 0.0
  %2162 = vmatpush1.msra.mxu0 0.0
  %2163 = vmatprep.subr.mxu0 0.0
  %2164 = vmatpush1.msra.mxu0 0.0
  %2165 = vmatprep.subr.mxu0 0.0
  %2166 = vmatpush1.msra.mxu0 0.0
  %2167 = vmatprep.subr.mxu0 0.0
  %2168 = vmatpush1.msra.mxu0 0.0
  %2169 = vmatprep.subr.mxu0 0.0
  %2170 = vmatpush1.msra.mxu0 0.0
  %2171 = vmatprep.subr.mxu0 0.0
  %2172 = vmatpush1.msra.mxu0 0.0
  %2173 = vmatprep.mubr.f32.mxu0 0.0
  %2174 = vmatmul.mubr.f32.gmra.mrb[0].mxu0 %v2085
  %v2175 = vpop.f32.mrb[0].mxu0
  %v2176 = vadd.f32 %v2107, %v2175
  %v2177 = vpop.f32.mrb[0].mxu0
  %2178 = vdwg.mxu0
  %vm2179 = vcmp.gt.f32.partialorder %v2176, 0.0
  %v2180 = vsel %vm2179, 1, 0
  %v2181 = vcvt.s32.f32 %v2180
  %s2182 = scalar_lea.vmem %s4, 88
  %2183 = vst [vmem:[%s2182] sm:$0xff] %v2181
  // Predicated region
  $region18: #{_forward_device.1} parent=0 // pred_check
    _
  $region19: #{_forward_device.1} parent=0 // pred_check_branch
    %2185 = sbr.rel (0) target = $region21
  $region20: #{_forward_device.1} parent=0 // pred_region
    _
  $region21: #{_forward_device.1} parent=0 // pred_fallthru
    _
  // Predicated region
  $region22: #{_forward_device.1} parent=0 // pred_check
    _
  $region23: #{_forward_device.1} parent=0 // pred_check_branch
    %2187 = sbr.rel (0) target = $region25
  $region24: #{_forward_device.1} parent=0 // pred_region
    _
  $region25: #{_forward_device.1} parent=0 // pred_fallthru
    _

</llo_original>
